<compile_context>
chip_gen: v7x
topology: tpu7x:2x2x1
jax: 0.10.0
libtpu: 0.0.40
codegen_flags: <defaults>
</compile_context>

<pallas_src>
import functools
import math

import jax
import jax.numpy as jnp
from jax import lax
from jax.experimental import pallas as pl
from jax.experimental.pallas import tpu as pltpu


# ----------------------------------------------------------------------------- helpers


def _round_up(x, m):
    return (x + m - 1) // m * m


def _vmem_info():
    """(capacity, per-step resident budget) - generation aware."""
    try:
        cap = int(pltpu.get_tpu_info().vmem_capacity_bytes)
    except Exception:
        cap = 64 << 20
    if cap >= (100 << 20):       # v5e / v6e: 128 MiB VMEM -> large blocks amortize step cost
        budget = 64 << 20
    else:                        # v7x: 64 MiB per TensorCore -> leave compiler headroom
        budget = 28 << 20
    return cap, budget


# ----------------------------------------------------------------------------- kernel


def _conv_im2col_kernel(w_ref, b_ref, x_ref, o_ref, col_ref, *,
                        K, Cin, Wo, row_block, n_chunks):
    """Stride-1 VALID conv of B pre-padded NHWC images via im2col-in-VMEM.

    w_ref  : (K*K*Cin, Cout_pad)              flattened HWIO weights (lane-padded Cout)
    b_ref  : (1, Cout_pad)                    bias
    x_ref  : (B, Hp, Wp, Cin)                 B pre-padded images, channel-last
    o_ref  : (n_chunks, B*row_block*Wo, Cout_pad)  chunk-major, lane-dense output slab
    col_ref: (B, row_block, Wo, K*K*Cin)      VMEM im2col scratch
    """
    w = w_ref[...]                 # (K*K*Cin, Cout_pad) - tiny, loaded once per step
    bias = b_ref[...]              # (1, Cout_pad)
    m = x_ref.shape[0] * row_block * Wo

    def chunk_body(c):
        r0 = c * row_block
        # K*K shifted copies into the im2col scratch (built once per chunk)...
        for dy in range(K):
            for dx in range(K):
                t = dy * K + dx
                col_ref[:, :, :, t * Cin:(t + 1) * Cin] = (
                    x_ref[:, pl.ds(r0 + dy, row_block), dx:dx + Wo, :])
        # ...then ONE MXU dot contracting the whole K*K*Cin axis for all B images.
        # Wo is a multiple of 8 (wrapper) so this leading-dim collapse is tile-aligned.
        lhs = col_ref[...].reshape(m, K * K * Cin)
        acc = jnp.dot(lhs, w, preferred_element_type=jnp.float32) + bias
        o_ref[c] = acc.astype(o_ref.dtype)     # full-lane (Cout_pad % 128 == 0) store

    if n_chunks == 1:
        chunk_body(0)
    else:
        def loop_body(c, carry):
            chunk_body(c)
            return carry
        lax.fori_loop(0, n_chunks, loop_body, 0, unroll=n_chunks <= 4)


# ----------------------------------------------------------------------------- conv wrapper


def _conv2d_stride1_nhwc(x, weight, bias, pads):
    """PyTorch-style stride-1 Conv2d with explicit (top, bottom, left, right) zero padding.

    x: (N, Cin, H, W), weight: (Cout, Cin, K, K), bias: (Cout,) or None.
    Returns channel-last output (N, Ho, Wo, Cout) float32.
    """
    N, Cin, H, W = map(int, x.shape)
    Cout, Cin_w, K, K2 = map(int, weight.shape)
    assert Cin == Cin_w and K == K2
    pt, pb, pleft, pright = (int(p) for p in pads)
    Ho = H + pt + pb - K + 1
    Wo = W + pleft + pright - K + 1
    assert Ho > 0 and Wo > 0

    Wo_pad = _round_up(Wo, 8)                 # sublane-aligned width
    cout_pad = _round_up(Cout, 128)           # lane-dense output / weights
    kkc = K * K * Cin
    kkc_lane = _round_up(kkc, 128)
    cin_lane = _round_up(Cin, 128)

    # Row chunk: one dot per chunk over M = B*row_block*Wo_pad rows; keep the im2col
    # scratch at a few MiB while M stays large enough to stream the MXU.
    target_m = max(256, min(4096, (4 << 20) // (kkc_lane * 4)))
    row_block = max(1, min(Ho, max(1, target_m // Wo_pad)))
    n_chunks = -(-Ho // row_block)
    Ho_pad = n_chunks * row_block
    Hp = Ho_pad + K - 1
    Wp = Wo_pad + K - 1

    # VMEM accounting with the real (8,128)-tiled layout (minor dims padded).
    in_img = Hp * _round_up(Wp, 8) * cin_lane * 4
    out_img = Ho_pad * Wo_pad * cout_pad * 4
    col_img = row_block * Wo_pad * kkc_lane * 4
    w_bytes = _round_up(kkc, 8) * cout_pad * 4 + 8 * cout_pad * 4
    per_img = 2 * (in_img + out_img) + col_img   # in/out double-buffered; col is scratch

    vmem_cap, budget = _vmem_info()
    avail = max(budget - w_bytes - (2 << 20), per_img)
    B = max(1, min(N, avail // per_img))
    if vmem_cap < (100 << 20) and N >= 4:
        B = min(B, max(1, N // 4))     # v7x: >=4 parallel steps (2 TCs x double-buffer)
    if N >= 2:
        B = min(B, -(-N // 2))         # always keep >=2 grid steps when possible
    B = int(max(1, B))

    n_blocks = -(-N // B)
    Npad = n_blocks * B
    M = B * row_block * Wo_pad

    vmem_limit = int(min(int(vmem_cap * 0.9),
                         max(16 << 20, B * per_img + 2 * w_bytes + (4 << 20))))

    # HBM-side layout plumbing: zero-pad + channel-last once.
    # TODO(synk): keep activations NHWC across consecutive UpConv layers so the
    # NCHW<->NHWC HBM passes only happen at the model boundary.
    xpad = jnp.pad(x.astype(jnp.float32),
                   ((0, Npad - N), (0, 0),
                    (pt, pb + (Ho_pad - Ho)),
                    (pleft, pright + (Wo_pad - Wo))))
    x_nhwc = jnp.transpose(xpad, (0, 2, 3, 1))           # (Npad, Hp, Wp, Cin)

    # Weight flattened to (K*K*Cin, Cout_pad): row index == (dy*K + dx)*Cin + ci,
    # matching the im2col feature order used in the kernel.
    w_flat = jnp.transpose(weight.astype(jnp.float32), (2, 3, 1, 0)).reshape(kkc, Cout)
    w_flat = jnp.pad(w_flat, ((0, 0), (0, cout_pad - Cout)))
    if bias is None:
        b2 = jnp.zeros((1, cout_pad), jnp.float32)
    else:
        b2 = jnp.pad(bias.reshape(1, Cout).astype(jnp.float32),
                     ((0, 0), (0, cout_pad - Cout)))

    kernel = functools.partial(_conv_im2col_kernel, K=K, Cin=Cin, Wo=Wo_pad,
                               row_block=row_block, n_chunks=n_chunks)

    out = pl.pallas_call(
        kernel,
        out_shape=jax.ShapeDtypeStruct((n_blocks * n_chunks, M, cout_pad), jnp.float32),
        grid_spec=pltpu.PrefetchScalarGridSpec(
            num_scalar_prefetch=0,
            grid=(n_blocks,),
            in_specs=[
                pl.BlockSpec((kkc, cout_pad), lambda i: (0, 0)),        # weights (constant)
                pl.BlockSpec((1, cout_pad), lambda i: (0, 0)),          # bias (constant)
                pl.BlockSpec((B, Hp, Wp, Cin), lambda i: (i, 0, 0, 0)),  # B images / step
            ],
            out_specs=pl.BlockSpec((n_chunks, M, cout_pad), lambda i: (i, 0, 0)),
            scratch_shapes=[pltpu.VMEM((B, row_block, Wo_pad, kkc), jnp.float32)],
        ),
        compiler_params=pltpu.CompilerParams(
            dimension_semantics=("parallel",),
            vmem_limit_bytes=vmem_limit,
        ),
    )(w_flat, b2, x_nhwc)

    # Un-permute the chunk-major slab back to NHWC; all slicing happens here (HBM side).
    out = out.reshape(n_blocks, n_chunks, B, row_block, Wo_pad, cout_pad)
    out = jnp.transpose(out, (0, 2, 1, 3, 4, 5))
    out = out.reshape(Npad, Ho_pad, Wo_pad, cout_pad)
    return out[:N, :Ho, :Wo, :Cout]                        # NHWC


def conv2d_stride1_pallas(x, weight, bias, padding):
    """NCHW-in / NCHW-out convenience wrapper (symmetric padding)."""
    p = int(padding)
    y = _conv2d_stride1_nhwc(x, weight, bias, (p, p, p, p))
    return jnp.transpose(y, (0, 3, 1, 2))


# ----------------------------------------------------------------------------- UpConv branches


def up_conv_pshuffel(x, weight, bias, *, ks, strd):
    """conv_type='pshuffel': Conv2d(ngf, new_ngf*strd^2, ks, 1, ceil((ks-1)//2)) + PixelShuffle."""
    pad = math.ceil((ks - 1) // 2)                       # == (ks-1)//2, as in the module
    y = _conv2d_stride1_nhwc(x, weight, bias, (pad, pad, pad, pad))   # NHWC (N,Ho,Wo,oc*s*s)
    N, Ho, Wo, C = y.shape
    s = strd
    if s == 1:
        return jnp.transpose(y, (0, 3, 1, 2))
    oc = C // (s * s)
    # PixelShuffle fused with the NHWC->NCHW conversion (single transpose):
    # out[n, c, h*s+i, w*s+j] = y[n, h, w, c*s*s + i*s + j]
    y = y.reshape(N, Ho, Wo, oc, s, s)
    y = jnp.transpose(y, (0, 3, 1, 4, 2, 5))
    return y.reshape(N, oc, Ho * s, Wo * s)


def up_conv_transpose(x, weight_t, bias, *, ks, strd):
    """conv_type='conv': ConvTranspose2d(ngf, new_ngf, ks+strd, strd, ceil(ks/2)).

    Sub-pixel decomposition: the flipped/(in,out)-swapped weight is split into strd^2
    phase sub-filters stacked on the output-channel axis, ONE stride-1 conv runs on the
    original (un-dilated) x, and the phases are interleaved PixelShuffle-style.  No
    zero-inserted (mostly-zero) tensor is ever materialized in HBM.
    """
    S = int(strd)
    KT = ks + S
    P = math.ceil(ks / 2)
    padp = KT - 1 - P                                    # equivalent stride-1 conv padding
    N, Cin, H, W = map(int, x.shape)
    Cout = int(weight_t.shape[1])
    Hout = (H - 1) * S - 2 * P + KT
    Wout = (W - 1) * S - 2 * P + KT

    w_eq = jnp.transpose(weight_t.astype(jnp.float32), (1, 0, 2, 3))[:, :, ::-1, ::-1]  # OIHW

    if S == 1:
        y = _conv2d_stride1_nhwc(x, w_eq, bias, (padp, padp, padp, padp))
        return jnp.transpose(y, (0, 3, 1, 2))

    # Per-phase tap bookkeeping (Python ints, traced once).
    kmin = [(padp - p) % S for p in range(S)]
    d = [(padp - p - kmin[p]) // S for p in range(S)]
    A = [-(-(KT - kmin[p]) // S) for p in range(S)]
    dmax = max(d)
    Ac = max(A[p] + dmax - d[p] for p in range(S))       # common sub-filter size

    # Stacked weight: channel index co*S*S + ph*S + pw (PixelShuffle ordering).
    w_stack = jnp.zeros((Cout, S, S, Cin, Ac, Ac), jnp.float32)
    for ph in range(S):
        for pw in range(S):
            for a in range(A[ph]):
                for b_ in range(A[pw]):
                    w_stack = w_stack.at[:, ph, pw, :,
                                         a + dmax - d[ph],
                                         b_ + dmax - d[pw]].set(
                        w_eq[:, :, kmin[ph] + S * a, kmin[pw] + S * b_])
    w_stack = w_stack.reshape(Cout * S * S, Cin, Ac, Ac)
    b_stack = None if bias is None else jnp.repeat(bias.astype(jnp.float32), S * S)

    # One stride-1 conv on x producing ceil(Hout/S) x ceil(Wout/S) per phase.
    Q = -(-Hout // S)
    Qw = -(-Wout // S)
    top, left = dmax, dmax
    bottom = Q + Ac - 1 - top - H
    right = Qw + Ac - 1 - left - W
    xs = x
    if bottom < 0:
        xs = xs[:, :, :H + bottom, :]
        bottom = 0
    if right < 0:
        xs = xs[:, :, :, :W + right]
        right = 0
    y = _conv2d_stride1_nhwc(xs, w_stack, b_stack, (top, bottom, left, right))  # (N,Q,Qw,Cout*S*S)

    # Interleave phases (PixelShuffle) fused with the NHWC->NCHW conversion.
    y = y.reshape(N, Q, Qw, Cout, S, S)
    y = jnp.transpose(y, (0, 3, 1, 4, 2, 5)).reshape(N, Cout, Q * S, Qw * S)
    return y[:, :, :Hout, :Wout]


def up_conv_interpolate(x, weight, bias, *, ks, strd):
    """conv_type='interpolate': bilinear Upsample(strd) + Conv2d(ks+strd, 1, ceil((ks+strd-1)/2))."""
    N, C, H, W = x.shape
    # TODO(synk): bilinear upsample stays in plain JAX (jax.image.resize, half-pixel
    # centers == align_corners=False); only the convolution runs in the Pallas kernel.
    xu = jax.image.resize(x.astype(jnp.float32), (N, C, H * strd, W * strd), method="bilinear")
    pad = math.ceil((ks + strd - 1) / 2)
    y = _conv2d_stride1_nhwc(xu, weight, bias, (pad, pad, pad, pad))
    return jnp.transpose(y, (0, 3, 1, 2))


def up_conv(x, params, *, conv_type, ks, strd):
    """UpConv.forward for the given conv_type."""
    if conv_type == "pshuffel":
        return up_conv_pshuffel(x, params["weight"], params["bias"], ks=ks, strd=strd)
    if conv_type == "conv":
        return up_conv_transpose(x, params["weight"], params["bias"], ks=ks, strd=strd)
    if conv_type == "interpolate":
        return up_conv_interpolate(x, params["weight"], params["bias"], ks=ks, strd=strd)
    raise ValueError(conv_type)


# ----------------------------------------------------------------------------- pure-JAX reference


def _conv_ref(x, w, b, pad, lhs_dilation=(1, 1)):
    y = lax.conv_general_dilated(
        x.astype(jnp.float32), w.astype(jnp.float32),
        window_strides=(1, 1), padding=[(pad, pad), (pad, pad)],
        lhs_dilation=lhs_dilation,
        dimension_numbers=("NCHW", "OIHW", "NCHW"),
        precision=lax.Precision.HIGHEST)
    if b is not None:
        y = y + b[None, :, None, None]
    return y


def up_conv_ref(x, params, *, conv_type, ks, strd):
    w, b = params["weight"], params["bias"]
    if conv_type == "pshuffel":
        y = _conv_ref(x, w, b, math.ceil((ks - 1) // 2))
        if strd == 1:
            return y
        N, C, Ho, Wo = y.shape
        oc = C // (strd * strd)
        y = y.reshape(N, oc, strd, strd, Ho, Wo).transpose(0, 1, 4, 2, 5, 3)
        return y.reshape(N, oc, Ho * strd, Wo * strd)
    if conv_type == "conv":
        K, P = ks + strd, math.ceil(ks / 2)
        w_eq = jnp.transpose(w, (1, 0, 2, 3))[:, :, ::-1, ::-1]
        return _conv_ref(x, w_eq, b, K - 1 - P, lhs_dilation=(strd, strd))
    if conv_type == "interpolate":
        N, C, H, W = x.shape
        xu = jax.image.resize(x, (N, C, H * strd, W * strd), method="bilinear")
        return _conv_ref(xu, w, b, math.ceil((ks + strd - 1) / 2))
    raise ValueError(conv_type)


# ----------------------------------------------------------------------------- demo / self-check


if __name__ == "__main__":
    key = jax.random.PRNGKey(0)
    ngf, new_ngf, ks, strd = 4, 4, 3, 2
    N, H, W = 2, 16, 16

    k_x, k1, k2, k3, k4, k5, k6 = jax.random.split(key, 7)
    x = jax.random.normal(k_x, (N, ngf, H, W), dtype=jnp.float32)

    cases = {
        "pshuffel": {     # Conv2d weight: (new_ngf*strd^2, ngf, ks, ks)
            "weight": 0.1 * jax.random.normal(k1, (new_ngf * strd * strd, ngf, ks, ks), jnp.float32),
            "bias": 0.1 * jax.random.normal(k2, (new_ngf * strd * strd,), jnp.float32),
        },
        "conv": {         # ConvTranspose2d weight: (ngf, new_ngf, ks+strd, ks+strd)
            "weight": 0.1 * jax.random.normal(k3, (ngf, new_ngf, ks + strd, ks + strd), jnp.float32),
            "bias": 0.1 * jax.random.normal(k4, (new_ngf,), jnp.float32),
        },
        "interpolate": {  # Conv2d weight: (new_ngf, ngf, ks+strd, ks+strd)
            "weight": 0.1 * jax.random.normal(k5, (new_ngf, ngf, ks + strd, ks + strd), jnp.float32),
            "bias": 0.1 * jax.random.normal(k6, (new_ngf,), jnp.float32),
        },
    }

    for conv_type, params in cases.items():
        got = jax.block_until_ready(up_conv(x, params, conv_type=conv_type, ks=ks, strd=strd))
        ref = jax.block_until_ready(up_conv_ref(x, params, conv_type=conv_type, ks=ks, strd=strd))
        assert got.shape == ref.shape, (conv_type, got.shape, ref.shape)
        err = float(jnp.max(jnp.abs(got - ref)))
        assert err < 1e-3, (conv_type, err)

    print("KERNEL_OK")
</pallas_src>

<mosaic_0001>
module attributes {stable_mosaic.version = 11 : i64} {
  func.func @_conv_im2col_kernel(%arg0: i32, %arg1: memref<36x128xf32, #tpu.memory_space<vmem>>, %arg2: memref<1x128xf32, #tpu.memory_space<vmem>>, %arg3: memref<1x18x18x4xf32, #tpu.memory_space<vmem>>, %arg4: memref<1x256x128xf32, #tpu.memory_space<vmem>>, %arg5: memref<1x16x16x36xf32, #tpu.memory_space<vmem>>) attributes {dimension_semantics = [#tpu.dimension_semantics<parallel>], iteration_bounds = array<i64: 2>, scalar_prefetch = 0 : i64, scratch_operands = 1 : i64, tpu.core_type = #tpu.core_type<tc>, window_params = [{pipeline_mode = #tpu.pipeline_mode<synchronous>, transform_indices = @transform_0, window_bounds = array<i64: 36, 128>}, {pipeline_mode = #tpu.pipeline_mode<synchronous>, transform_indices = @transform_1, window_bounds = array<i64: 1, 128>}, {transform_indices = @transform_2, window_bounds = array<i64: 1, 18, 18, 4>}, {transform_indices = @transform_3, window_bounds = array<i64: 1, 256, 128>}]} {
    %c0 = arith.constant 0 : index
    %c0_0 = arith.constant 0 : index
    %0 = vector.load %arg1[%c0, %c0_0] : memref<36x128xf32, #tpu.memory_space<vmem>>, vector<36x128xf32>
    %c0_1 = arith.constant 0 : index
    %c0_2 = arith.constant 0 : index
    %1 = vector.load %arg2[%c0_1, %c0_2] : memref<1x128xf32, #tpu.memory_space<vmem>>, vector<1x128xf32>
    %c0_3 = arith.constant 0 : index
    %c0_4 = arith.constant 0 : index
    %c0_5 = arith.constant 0 : index
    %c0_6 = arith.constant 0 : index
    %2 = vector.load %arg3[%c0_3, %c0_4, %c0_5, %c0_6] : memref<1x18x18x4xf32, #tpu.memory_space<vmem>>, vector<1x16x16x4xf32>
    %c0_7 = arith.constant 0 : index
    %c0_8 = arith.constant 0 : index
    %c0_9 = arith.constant 0 : index
    %c0_10 = arith.constant 0 : index
    %3 = vector.load %arg5[%c0_7, %c0_8, %c0_9, %c0_10] : memref<1x16x16x36xf32, #tpu.memory_space<vmem>>, vector<1x16x16x4xf32>
    tpu.vector_store %arg5[%c0_7, %c0_8, %c0_9, %c0_10], %2 {strides = array<i32>} : memref<1x16x16x36xf32, #tpu.memory_space<vmem>>, vector<1x16x16x4xf32>,
    %c0_11 = arith.constant 0 : index
    %c0_12 = arith.constant 0 : index
    %c1 = arith.constant 1 : index
    %c0_13 = arith.constant 0 : index
    %4 = vector.load %arg3[%c0_11, %c0_12, %c1, %c0_13] : memref<1x18x18x4xf32, #tpu.memory_space<vmem>>, vector<1x16x16x4xf32>
    %c0_14 = arith.constant 0 : index
    %c0_15 = arith.constant 0 : index
    %c0_16 = arith.constant 0 : index
    %c4 = arith.constant 4 : index
    %5 = vector.load %arg5[%c0_14, %c0_15, %c0_16, %c4] : memref<1x16x16x36xf32, #tpu.memory_space<vmem>>, vector<1x16x16x4xf32>
    tpu.vector_store %arg5[%c0_14, %c0_15, %c0_16, %c4], %4 {strides = array<i32>} : memref<1x16x16x36xf32, #tpu.memory_space<vmem>>, vector<1x16x16x4xf32>,
    %c0_17 = arith.constant 0 : index
    %c0_18 = arith.constant 0 : index
    %c2 = arith.constant 2 : index
    %c0_19 = arith.constant 0 : index
    %6 = vector.load %arg3[%c0_17, %c0_18, %c2, %c0_19] : memref<1x18x18x4xf32, #tpu.memory_space<vmem>>, vector<1x16x16x4xf32>
    %c0_20 = arith.constant 0 : index
    %c0_21 = arith.constant 0 : index
    %c0_22 = arith.constant 0 : index
    %c8 = arith.constant 8 : index
    %7 = vector.load %arg5[%c0_20, %c0_21, %c0_22, %c8] : memref<1x16x16x36xf32, #tpu.memory_space<vmem>>, vector<1x16x16x4xf32>
    tpu.vector_store %arg5[%c0_20, %c0_21, %c0_22, %c8], %6 {strides = array<i32>} : memref<1x16x16x36xf32, #tpu.memory_space<vmem>>, vector<1x16x16x4xf32>,
    %c0_23 = arith.constant 0 : index
    %c1_24 = arith.constant 1 : index
    %c0_25 = arith.constant 0 : index
    %c0_26 = arith.constant 0 : index
    %8 = vector.load %arg3[%c0_23, %c1_24, %c0_25, %c0_26] : memref<1x18x18x4xf32, #tpu.memory_space<vmem>>, vector<1x16x16x4xf32>
    %c0_27 = arith.constant 0 : index
    %c0_28 = arith.constant 0 : index
    %c0_29 = arith.constant 0 : index
    %c12 = arith.constant 12 : index
    %9 = vector.load %arg5[%c0_27, %c0_28, %c0_29, %c12] : memref<1x16x16x36xf32, #tpu.memory_space<vmem>>, vector<1x16x16x4xf32>
    tpu.vector_store %arg5[%c0_27, %c0_28, %c0_29, %c12], %8 {strides = array<i32>} : memref<1x16x16x36xf32, #tpu.memory_space<vmem>>, vector<1x16x16x4xf32>,
    %c0_30 = arith.constant 0 : index
    %c1_31 = arith.constant 1 : index
    %c1_32 = arith.constant 1 : index
    %c0_33 = arith.constant 0 : index
    %10 = vector.load %arg3[%c0_30, %c1_31, %c1_32, %c0_33] : memref<1x18x18x4xf32, #tpu.memory_space<vmem>>, vector<1x16x16x4xf32>
    %c0_34 = arith.constant 0 : index
    %c0_35 = arith.constant 0 : index
    %c0_36 = arith.constant 0 : index
    %c16 = arith.constant 16 : index
    %11 = vector.load %arg5[%c0_34, %c0_35, %c0_36, %c16] : memref<1x16x16x36xf32, #tpu.memory_space<vmem>>, vector<1x16x16x4xf32>
    tpu.vector_store %arg5[%c0_34, %c0_35, %c0_36, %c16], %10 {strides = array<i32>} : memref<1x16x16x36xf32, #tpu.memory_space<vmem>>, vector<1x16x16x4xf32>,
    %c0_37 = arith.constant 0 : index
    %c1_38 = arith.constant 1 : index
    %c2_39 = arith.constant 2 : index
    %c0_40 = arith.constant 0 : index
    %12 = vector.load %arg3[%c0_37, %c1_38, %c2_39, %c0_40] : memref<1x18x18x4xf32, #tpu.memory_space<vmem>>, vector<1x16x16x4xf32>
    %c0_41 = arith.constant 0 : index
    %c0_42 = arith.constant 0 : index
    %c0_43 = arith.constant 0 : index
    %c20 = arith.constant 20 : index
    %13 = vector.load %arg5[%c0_41, %c0_42, %c0_43, %c20] : memref<1x16x16x36xf32, #tpu.memory_space<vmem>>, vector<1x16x16x4xf32>
    tpu.vector_store %arg5[%c0_41, %c0_42, %c0_43, %c20], %12 {strides = array<i32>} : memref<1x16x16x36xf32, #tpu.memory_space<vmem>>, vector<1x16x16x4xf32>,
    %c0_44 = arith.constant 0 : index
    %c2_45 = arith.constant 2 : index
    %c0_46 = arith.constant 0 : index
    %c0_47 = arith.constant 0 : index
    %14 = vector.load %arg3[%c0_44, %c2_45, %c0_46, %c0_47] : memref<1x18x18x4xf32, #tpu.memory_space<vmem>>, vector<1x16x16x4xf32>
    %c0_48 = arith.constant 0 : index
    %c0_49 = arith.constant 0 : index
    %c0_50 = arith.constant 0 : index
    %c24 = arith.constant 24 : index
    %15 = vector.load %arg5[%c0_48, %c0_49, %c0_50, %c24] : memref<1x16x16x36xf32, #tpu.memory_space<vmem>>, vector<1x16x16x4xf32>
    tpu.vector_store %arg5[%c0_48, %c0_49, %c0_50, %c24], %14 {strides = array<i32>} : memref<1x16x16x36xf32, #tpu.memory_space<vmem>>, vector<1x16x16x4xf32>,
    %c0_51 = arith.constant 0 : index
    %c2_52 = arith.constant 2 : index
    %c1_53 = arith.constant 1 : index
    %c0_54 = arith.constant 0 : index
    %16 = vector.load %arg3[%c0_51, %c2_52, %c1_53, %c0_54] : memref<1x18x18x4xf32, #tpu.memory_space<vmem>>, vector<1x16x16x4xf32>
    %c0_55 = arith.constant 0 : index
    %c0_56 = arith.constant 0 : index
    %c0_57 = arith.constant 0 : index
    %c28 = arith.constant 28 : index
    %17 = vector.load %arg5[%c0_55, %c0_56, %c0_57, %c28] : memref<1x16x16x36xf32, #tpu.memory_space<vmem>>, vector<1x16x16x4xf32>
    tpu.vector_store %arg5[%c0_55, %c0_56, %c0_57, %c28], %16 {strides = array<i32>} : memref<1x16x16x36xf32, #tpu.memory_space<vmem>>, vector<1x16x16x4xf32>,
    %c0_58 = arith.constant 0 : index
    %c2_59 = arith.constant 2 : index
    %c2_60 = arith.constant 2 : index
    %c0_61 = arith.constant 0 : index
    %18 = vector.load %arg3[%c0_58, %c2_59, %c2_60, %c0_61] : memref<1x18x18x4xf32, #tpu.memory_space<vmem>>, vector<1x16x16x4xf32>
    %c0_62 = arith.constant 0 : index
    %c0_63 = arith.constant 0 : index
    %c0_64 = arith.constant 0 : index
    %c32 = arith.constant 32 : index
    %19 = vector.load %arg5[%c0_62, %c0_63, %c0_64, %c32] : memref<1x16x16x36xf32, #tpu.memory_space<vmem>>, vector<1x16x16x4xf32>
    tpu.vector_store %arg5[%c0_62, %c0_63, %c0_64, %c32], %18 {strides = array<i32>} : memref<1x16x16x36xf32, #tpu.memory_space<vmem>>, vector<1x16x16x4xf32>,
    %c0_65 = arith.constant 0 : index
    %c0_66 = arith.constant 0 : index
    %c0_67 = arith.constant 0 : index
    %c0_68 = arith.constant 0 : index
    %20 = vector.load %arg5[%c0_65, %c0_66, %c0_67, %c0_68] : memref<1x16x16x36xf32, #tpu.memory_space<vmem>>, vector<1x16x16x36xf32>
    %21 = vector.shape_cast %20 : vector<1x16x16x36xf32> to vector<256x36xf32>
    %cst = arith.constant dense<0.000000e+00> : vector<256x128xf32>
    %22 = tpu.matmul %21, %0, %cst {dimension_numbers = #tpu.dot_dimension_numbers<[1], [0], [0], [1], [0, 0, 1, 1], [], []>} : vector<256x36xf32>, vector<36x128xf32>, vector<256x128xf32> -> vector<256x128xf32>
    %23 = vector.broadcast %1 : vector<1x128xf32> to vector<256x128xf32>
    %24 = arith.addf %22, %23 : vector<256x128xf32>
    %c0_69 = arith.constant 0 : index
    %c0_70 = arith.constant 0 : index
    %c0_71 = arith.constant 0 : index
    %25 = vector.load %arg4[%c0_69, %c0_70, %c0_71] : memref<1x256x128xf32, #tpu.memory_space<vmem>>, vector<1x256x128xf32>
    %26 = vector.shape_cast %25 : vector<1x256x128xf32> to vector<256x128xf32>
    %27 = vector.shape_cast %24 : vector<256x128xf32> to vector<1x256x128xf32>
    tpu.vector_store %arg4[%c0_69, %c0_70, %c0_71], %27 {strides = array<i32>} : memref<1x256x128xf32, #tpu.memory_space<vmem>>, vector<1x256x128xf32>,
    return
  }
  func.func @transform_0(%arg0: i32) -> (i32, i32) {
    %c0_i32 = arith.constant 0 : i32
    %c0_i32_0 = arith.constant 0 : i32
    %c0_i32_1 = arith.constant 0 : i32
    return %c0_i32, %c0_i32_0 : i32, i32
  }
  func.func @transform_1(%arg0: i32) -> (i32, i32) {
    %c0_i32 = arith.constant 0 : i32
    %c0_i32_0 = arith.constant 0 : i32
    %c0_i32_1 = arith.constant 0 : i32
    return %c0_i32, %c0_i32_0 : i32, i32
  }
  func.func @transform_2(%arg0: i32) -> (i32, i32, i32, i32) {
    %c0_i32 = arith.constant 0 : i32
    %c0_i32_0 = arith.constant 0 : i32
    %c0_i32_1 = arith.constant 0 : i32
    %c0_i32_2 = arith.constant 0 : i32
    return %arg0, %c0_i32, %c0_i32_0, %c0_i32_1 : i32, i32, i32, i32
  }
  func.func @transform_3(%arg0: i32) -> (i32, i32, i32) {
    %c0_i32 = arith.constant 0 : i32
    %c0_i32_0 = arith.constant 0 : i32
    %c0_i32_1 = arith.constant 0 : i32
    return %arg0, %c0_i32, %c0_i32_0 : i32, i32, i32
  }
}

</mosaic_0001>

<llo_original>
// kernel: tpu_custom_call.1
$region0: #{tpu_custom_call.1}
  #allocation0 [shape = 'u32[]', space=smem, size = 0x4, offset = 0x4, fixed_abs, tag = 'smem constant byte address 0x4 - core index']
  #allocation1 [shape = 'u32[144,128]{1,0:T(1,128)}', space=vmem, size = 0x12000, scoped, tag = 'internal scratch']
  #allocation2 [shape = 'f32[1,16,16,36]{3,2,1,0:T(8,128)}', space=vmem, size = 0x20000, scoped, tag = 'scratch operand']
  %s0 = inlined_call_operand.vmem [shape: f32[36,128], index: 0, kind: input, shape index: {}]
  %s1 = inlined_call_operand.vmem [shape: f32[1,128], index: 1, kind: input, shape index: {}]
  %s2 = inlined_call_operand.vmem [shape: f32[2,18,18,4], index: 2, kind: input, shape index: {}]
  %s3 = inlined_call_operand.hbm [shape: f32[2,256,128], index: 3, kind: output, shape index: {}]
  %s4 = sld [smem:[#allocation0]]
  $region45: #{tpu_custom_call.1} parent=0
    _
  %s6 = ssub.s32 1, %s4
  %s7 = scalar_select 0, %s6, %s4
  $region1: #{tpu_custom_call.1} parent=0
    #allocation3 [shape = 'u8[262144]{0}', space=vmem, size = 0x40000, scoped, tag = 'output window, operand 0']
    #allocation4 [shape = 's32[2]{0}', space=sflag, size = 0x8, scoped, tag = 'scoped memory for tpu_custom_call.1']
    %8 = vsyncpa [#allocation4], 0
    %s9 = scalar_lea.sflag [#allocation4], 1
    %10 = vsyncpa %s9, 0
    loop: start=0, step=1, limit=4
    $region2: #{tpu_custom_call.1} parent=1 // loop_pre_header
      _
    $region3: #{tpu_custom_call.1} parent=1 // loop_header
      %s12 = sphi 0, %s16
      %p13 = scmp.ge.s32.totalorder %s12, 4
      %s20 = sphi 0, %s20
      %s22 = sphi 0, %s20
      %s23 = sphi 0, %s22
      %s37 = sphi 0, %s23
      %s41 = sphi 0, %s41
      %s43 = sphi 0, %s41
      %s44 = sphi 0, %s43
      %s58 = sphi 0, %s44
      %s64 = sphi 0, %s66
      %s67 = sphi 0, %s64
      %s68 = sphi 0, %s67
      %s84 = sphi 0, %s68
      %s90 = sphi 0, %s92
      %s93 = sphi 0, %s90
      %s94 = sphi 0, %s93
      %s110 = sphi 0, %s94
    $region4: #{tpu_custom_call.1} parent=1 // loop_header_branch
      %15 = sbr.rel (%p13) target = $region8
    $region5: #{tpu_custom_call.1} parent=1 // loop_body
      %s17 = ssub.s32 %s12, 1
      %s18 = ssub.s32 %s12, 2
      %s19 = sadd.s32 %s12, 1
      %s21 = sadd.s32 %s20, 1
      %p24 = scmp.eq.s32.totalorder %s12, 1
      %p25 = scmp.ne.s32.totalorder %s20, %s22
      %p26 = scmp.eq.s32.totalorder %s12, 0
      %p27 = por %p25, %p26
      %p28 = scmp.ne.s32.totalorder %s20, %s22
      %p29 = scmp.eq.s32.totalorder %s17, 1
      %p30 = por %p28, %p29
      %p31 = scmp.ne.s32.totalorder %s22, %s23
      %p32 = scmp.eq.s32.totalorder %s17, 0
      %p33 = por %p31, %p32
      %p34 = scmp.ne.s32.totalorder %s22, %s23
      %p35 = scmp.eq.s32.totalorder %s18, 1
      %p36 = por %p34, %p35
      %p38 = scmp.ne.s32.totalorder %s23, %s37
      %p39 = scmp.eq.s32.totalorder %s18, 0
      %p40 = por %p38, %p39
      %s42 = sadd.s32 %s41, 1
      %p45 = scmp.eq.s32.totalorder %s12, 1
      %p46 = scmp.ne.s32.totalorder %s41, %s43
      %p47 = scmp.eq.s32.totalorder %s12, 0
      %p48 = por %p46, %p47
      %p49 = scmp.ne.s32.totalorder %s41, %s43
      %p50 = scmp.eq.s32.totalorder %s17, 1
      %p51 = por %p49, %p50
      %p52 = scmp.ne.s32.totalorder %s43, %s44
      %p53 = scmp.eq.s32.totalorder %s17, 0
      %p54 = por %p52, %p53
      %p55 = scmp.ne.s32.totalorder %s43, %s44
      %p56 = scmp.eq.s32.totalorder %s18, 1
      %p57 = por %p55, %p56
      %p59 = scmp.ne.s32.totalorder %s44, %s58
      %p60 = scmp.eq.s32.totalorder %s18, 0
      %p61 = por %p59, %p60
      %s62 = ssub.s32 %s12, %s19
      %p63 = scmp.eq.s32.totalorder %s62, 0
      %s65 = sadd.s32 %s64, 1
      %s66 = scalar_select %p63, %s64, %s65
      %p69 = pneg %p63
      %p70 = scmp.eq.s32.totalorder %s12, 1
      %p71 = por %p69, %p70
      %p72 = scmp.ne.s32.totalorder %s64, %s67
      %p73 = scmp.eq.s32.totalorder %s12, 0
      %p74 = por %p72, %p73
      %p75 = scmp.ne.s32.totalorder %s64, %s67
      %p76 = scmp.eq.s32.totalorder %s17, 1
      %p77 = por %p75, %p76
      %p78 = scmp.ne.s32.totalorder %s67, %s68
      %p79 = scmp.eq.s32.totalorder %s17, 0
      %p80 = por %p78, %p79
      %p81 = scmp.ne.s32.totalorder %s67, %s68
      %p82 = scmp.eq.s32.totalorder %s18, 1
      %p83 = por %p81, %p82
      %p85 = scmp.ne.s32.totalorder %s68, %s84
      %p86 = scmp.eq.s32.totalorder %s18, 0
      %p87 = por %p85, %p86
      %s88 = ssub.s32 %s12, %s19
      %p89 = scmp.eq.s32.totalorder %s88, 0
      %s91 = sadd.s32 %s90, 1
      %s92 = scalar_select %p89, %s90, %s91
      %p95 = pneg %p89
      %p96 = scmp.eq.s32.totalorder %s12, 1
      %p97 = por %p95, %p96
      %p98 = scmp.ne.s32.totalorder %s90, %s93
      %p99 = scmp.eq.s32.totalorder %s12, 0
      %p100 = por %p98, %p99
      %p101 = scmp.ne.s32.totalorder %s90, %s93
      %p102 = scmp.eq.s32.totalorder %s17, 1
      %p103 = por %p101, %p102
      %p104 = scmp.ne.s32.totalorder %s93, %s94
      %p105 = scmp.eq.s32.totalorder %s17, 0
      %p106 = por %p104, %p105
      %p107 = scmp.ne.s32.totalorder %s93, %s94
      %p108 = scmp.eq.s32.totalorder %s18, 1
      %p109 = por %p107, %p108
      %p111 = scmp.ne.s32.totalorder %s94, %s110
      %p112 = scmp.eq.s32.totalorder %s18, 0
      %p113 = por %p111, %p112
      %p114 = scmp.le.s32.totalorder 1, %s12
      %p115 = scmp.lt.s32.totalorder %s12, 3
      %p116 = pnand %p114, %p115
      %p117 = pneg %p116
      // Predicated region
      $region9: #{tpu_custom_call.1} parent=5 // pred_check
        _
      $region10: #{tpu_custom_call.1} parent=5 // pred_check_branch
        %119 = sbr.rel (%p116) target = $region12
      $region11: #{tpu_custom_call.1} parent=5 // pred_region
        %s120 = ssub.s32 %s12, 1
        // Predicated region
        $region13: #{tpu_custom_call.1} parent=11 // pred_check
          %p121 = pneg %p33
        $region14: #{tpu_custom_call.1} parent=11 // pred_check_branch
          %123 = sbr.rel (%p121) target = $region16
        $region15: #{tpu_custom_call.1} parent=11 // pred_region
          _
        $region16: #{tpu_custom_call.1} parent=11 // pred_fallthru
          _
        // Predicated region
        $region17: #{tpu_custom_call.1} parent=11 // pred_check
          %p124 = pneg %p54
        $region18: #{tpu_custom_call.1} parent=11 // pred_check_branch
          %126 = sbr.rel (%p124) target = $region20
        $region19: #{tpu_custom_call.1} parent=11 // pred_region
          _
        $region20: #{tpu_custom_call.1} parent=11 // pred_fallthru
          _
      $region12: #{tpu_custom_call.1} parent=5 // pred_fallthru
        _
      %p127 = scmp.lt.s32.totalorder %s12, 2
      // Predicated region
      $region21: #{tpu_custom_call.1} parent=5 // pred_check
        %p128 = pneg %p127
      $region22: #{tpu_custom_call.1} parent=5 // pred_check_branch
        %130 = sbr.rel (%p128) target = $region24
      $region23: #{tpu_custom_call.1} parent=5 // pred_region
        // Predicated region
        $region25: #{tpu_custom_call.1} parent=23 // pred_check
          %p131 = pneg %p74
        $region26: #{tpu_custom_call.1} parent=23 // pred_check_branch
          %133 = sbr.rel (%p131) target = $region28
        $region27: #{tpu_custom_call.1} parent=23 // pred_region
          %p134 = scmp.lt.s32.totalorder %s12, 1
          %s135 = scalar_select %p134, %s12, 1
          %s136 = smul.addr %s135, 54
          %s137 = smul.addr %s136, 8
          %s138 = scalar_lea.vmem %s2, %s137
        $region28: #{tpu_custom_call.1} parent=23 // pred_fallthru
          _
      $region24: #{tpu_custom_call.1} parent=5 // pred_fallthru
        _
      %p139 = scmp.le.s32.totalorder 1, %s12
      %p140 = scmp.lt.s32.totalorder %s12, 3
      %p141 = pnand %p139, %p140
      %p142 = pneg %p141
      // Predicated region
      $region29: #{tpu_custom_call.1} parent=5 // pred_check
        _
      $region30: #{tpu_custom_call.1} parent=5 // pred_check_branch
        %144 = sbr.rel (%p141) target = $region32
      $region31: #{tpu_custom_call.1} parent=5 // pred_region
        %s145 = ssub.s32 %s12, 1
        %p146 = pneg %p33
        %p147 = pneg %p30
        %p148 = pneg %p54
        %p149 = pneg %p51
        %p150 = scmp.lt.s32.totalorder %s17, 1
        %s151 = scalar_select %p150, %s17, 1
        %s152 = smul.addr %s151, 54
        %s153 = smul.addr %s152, 8
        %s154 = scalar_lea.vmem %s2, %s153
        %p155 = pneg %p80
        %p156 = pneg %p77
        %p157 = pneg %p106
        %p158 = pneg %p103
        %s159 = sand.u32 %s93, 1
        %s160 = scalar_lea.sflag [#allocation4], %s159
        %s161 = sand.u32 %s93, 1
        %s162 = smul.addr %s161, 256
        %s163 = scalar_lea.vmem [#allocation3], %s162
        %p164 = scmp.lt.s32.totalorder %s17, 1
        %s165 = scalar_select %p164, %s17, 1
        %s166 = smul.addr %s165, 54
        %s167 = smul.addr %s166, 8
        %s168 = scalar_lea.vmem %s2, %s167
        %v169 = vld [vmem:[%s0] sm:$0xff]
        %v170 = vld [vmem:[%s0 + $0x8] sm:$0xff]
        %v171 = vld [vmem:[%s0 + $0x10] sm:$0xff]
        %v172 = vld [vmem:[%s0 + $0x18] sm:$0xff]
        %v173 = vld [vmem:[%s0 + $0x20] sm:$0xf]
        %v174 = vld [vmem:[%s1] sm:$0x1]
        %v175 = vld [vmem:[%s168] sm:$0xff]
        %v176 = vld [vmem:[%s168 + $0x8] sm:$0xff]
        %v177 = vld [vmem:[%s168 + $0x18] sm:$0xff]
        %v178 = vld [vmem:[%s168 + $0x20] sm:$0xff]
        %v179 = vld [vmem:[%s168 + $0x30] sm:$0xff]
        %v180 = vld [vmem:[%s168 + $0x38] sm:$0xff]
        %v181 = vld [vmem:[%s168 + $0x48] sm:$0xff]
        %v182 = vld [vmem:[%s168 + $0x50] sm:$0xff]
        %v183 = vld [vmem:[%s168 + $0x60] sm:$0xff]
        %v184 = vld [vmem:[%s168 + $0x68] sm:$0xff]
        %v185 = vld [vmem:[%s168 + $0x78] sm:$0xff]
        %v186 = vld [vmem:[%s168 + $0x80] sm:$0xff]
        %v187 = vld [vmem:[%s168 + $0x90] sm:$0xff]
        %v188 = vld [vmem:[%s168 + $0x98] sm:$0xff]
        %v189 = vld [vmem:[%s168 + $0xa8] sm:$0xff]
        %v190 = vld [vmem:[%s168 + $0xb0] sm:$0xff]
        %v191 = vld [vmem:[%s168 + $0xc0] sm:$0xff]
        %v192 = vld [vmem:[%s168 + $0xc8] sm:$0xff]
        %v193 = vld [vmem:[%s168 + $0xd8] sm:$0xff]
        %v194 = vld [vmem:[%s168 + $0xe0] sm:$0xff]
        %v195 = vld [vmem:[%s168 + $0xf0] sm:$0xff]
        %v196 = vld [vmem:[%s168 + $0xf8] sm:$0xff]
        %v197 = vld [vmem:[%s168 + $0x108] sm:$0xff]
        %v198 = vld [vmem:[%s168 + $0x110] sm:$0xff]
        %v199 = vld [vmem:[%s168 + $0x120] sm:$0xff]
        %v200 = vld [vmem:[%s168 + $0x128] sm:$0xff]
        %v201 = vld [vmem:[%s168 + $0x138] sm:$0xff]
        %v202 = vld [vmem:[%s168 + $0x140] sm:$0xff]
        %v203 = vld [vmem:[%s168 + $0x150] sm:$0xff]
        %v204 = vld [vmem:[%s168 + $0x158] sm:$0xff]
        %v205 = vld [vmem:[%s168 + $0x168] sm:$0xff]
        %v206 = vld [vmem:[%s168 + $0x170] sm:$0xff]
        %vm207 = vcmask 31744
        %208 = vst.msk [vmem:[#allocation2] sm:$0xff] %vm207, %v175
        %209 = vst.msk [vmem:[#allocation2 + $0x8] sm:$0xff] %vm207, %v176
        %210 = vst.msk [vmem:[#allocation2 + $0x10] sm:$0xff] %vm207, %v177
        %211 = vst.msk [vmem:[#allocation2 + $0x18] sm:$0xff] %vm207, %v178
        %212 = vst.msk [vmem:[#allocation2 + $0x20] sm:$0xff] %vm207, %v179
        %213 = vst.msk [vmem:[#allocation2 + $0x28] sm:$0xff] %vm207, %v180
        %214 = vst.msk [vmem:[#allocation2 + $0x30] sm:$0xff] %vm207, %v181
        %215 = vst.msk [vmem:[#allocation2 + $0x38] sm:$0xff] %vm207, %v182
        %216 = vst.msk [vmem:[#allocation2 + $0x40] sm:$0xff] %vm207, %v183
        %217 = vst.msk [vmem:[#allocation2 + $0x48] sm:$0xff] %vm207, %v184
        %218 = vst.msk [vmem:[#allocation2 + $0x50] sm:$0xff] %vm207, %v185
        %219 = vst.msk [vmem:[#allocation2 + $0x58] sm:$0xff] %vm207, %v186
        %220 = vst.msk [vmem:[#allocation2 + $0x60] sm:$0xff] %vm207, %v187
        %221 = vst.msk [vmem:[#allocation2 + $0x68] sm:$0xff] %vm207, %v188
        %222 = vst.msk [vmem:[#allocation2 + $0x70] sm:$0xff] %vm207, %v189
        %223 = vst.msk [vmem:[#allocation2 + $0x78] sm:$0xff] %vm207, %v190
        %224 = vst.msk [vmem:[#allocation2 + $0x80] sm:$0xff] %vm207, %v191
        %225 = vst.msk [vmem:[#allocation2 + $0x88] sm:$0xff] %vm207, %v192
        %226 = vst.msk [vmem:[#allocation2 + $0x90] sm:$0xff] %vm207, %v193
        %227 = vst.msk [vmem:[#allocation2 + $0x98] sm:$0xff] %vm207, %v194
        %228 = vst.msk [vmem:[#allocation2 + $0xa0] sm:$0xff] %vm207, %v195
        %229 = vst.msk [vmem:[#allocation2 + $0xa8] sm:$0xff] %vm207, %v196
        %230 = vst.msk [vmem:[#allocation2 + $0xb0] sm:$0xff] %vm207, %v197
        %231 = vst.msk [vmem:[#allocation2 + $0xb8] sm:$0xff] %vm207, %v198
        %232 = vst.msk [vmem:[#allocation2 + $0xc0] sm:$0xff] %vm207, %v199
        %233 = vst.msk [vmem:[#allocation2 + $0xc8] sm:$0xff] %vm207, %v200
        %234 = vst.msk [vmem:[#allocation2 + $0xd0] sm:$0xff] %vm207, %v201
        %235 = vst.msk [vmem:[#allocation2 + $0xd8] sm:$0xff] %vm207, %v202
        %236 = vst.msk [vmem:[#allocation2 + $0xe0] sm:$0xff] %vm207, %v203
        %237 = vst.msk [vmem:[#allocation2 + $0xe8] sm:$0xff] %vm207, %v204
        %238 = vst.msk [vmem:[#allocation2 + $0xf0] sm:$0xff] %vm207, %v205
        %239 = vst.msk [vmem:[#allocation2 + $0xf8] sm:$0xff] %vm207, %v206
        %v240 = vld [vmem:[%s168 + $0x1] sm:$0xff]
        %v241 = vld [vmem:[%s168 + $0x9] sm:$0xff]
        %v242 = vld [vmem:[%s168 + $0x19] sm:$0xff]
        %v243 = vld [vmem:[%s168 + $0x21] sm:$0xff]
        %v244 = vld [vmem:[%s168 + $0x31] sm:$0xff]
        %v245 = vld [vmem:[%s168 + $0x39] sm:$0xff]
        %v246 = vld [vmem:[%s168 + $0x49] sm:$0xff]
        %v247 = vld [vmem:[%s168 + $0x51] sm:$0xff]
        %v248 = vld [vmem:[%s168 + $0x61] sm:$0xff]
        %v249 = vld [vmem:[%s168 + $0x69] sm:$0xff]
        %v250 = vld [vmem:[%s168 + $0x79] sm:$0xff]
        %v251 = vld [vmem:[%s168 + $0x81] sm:$0xff]
        %v252 = vld [vmem:[%s168 + $0x91] sm:$0xff]
        %v253 = vld [vmem:[%s168 + $0x99] sm:$0xff]
        %v254 = vld [vmem:[%s168 + $0xa9] sm:$0xff]
        %v255 = vld [vmem:[%s168 + $0xb1] sm:$0xff]
        %v256 = vld [vmem:[%s168 + $0xc1] sm:$0xff]
        %v257 = vld [vmem:[%s168 + $0xc9] sm:$0xff]
        %v258 = vld [vmem:[%s168 + $0xd9] sm:$0xff]
        %v259 = vld [vmem:[%s168 + $0xe1] sm:$0xff]
        %v260 = vld [vmem:[%s168 + $0xf1] sm:$0xff]
        %v261 = vld [vmem:[%s168 + $0xf9] sm:$0xff]
        %v262 = vld [vmem:[%s168 + $0x109] sm:$0xff]
        %v263 = vld [vmem:[%s168 + $0x111] sm:$0xff]
        %v264 = vld [vmem:[%s168 + $0x121] sm:$0xff]
        %v265 = vld [vmem:[%s168 + $0x129] sm:$0xff]
        %v266 = vld [vmem:[%s168 + $0x139] sm:$0xff]
        %v267 = vld [vmem:[%s168 + $0x141] sm:$0xff]
        %v268 = vld [vmem:[%s168 + $0x151] sm:$0xff]
        %v269 = vld [vmem:[%s168 + $0x159] sm:$0xff]
        %v270 = vld [vmem:[%s168 + $0x169] sm:$0xff]
        %v271 = vld [vmem:[%s168 + $0x171] sm:$0xff]
        %304 = vrot.lane.b32.xlu0 %v240, 4
        %v305 = vpop.permute.xlu0 %304
        %306 = vrot.lane.b32.xlu0 %v241, 4
        %v307 = vpop.permute.xlu0 %306
        %308 = vrot.lane.b32.xlu0 %v242, 4
        %v309 = vpop.permute.xlu0 %308
        %310 = vrot.lane.b32.xlu0 %v243, 4
        %v311 = vpop.permute.xlu0 %310
        %312 = vrot.lane.b32.xlu0 %v244, 4
        %v313 = vpop.permute.xlu0 %312
        %314 = vrot.lane.b32.xlu0 %v245, 4
        %v315 = vpop.permute.xlu0 %314
        %316 = vrot.lane.b32.xlu0 %v246, 4
        %v317 = vpop.permute.xlu0 %316
        %318 = vrot.lane.b32.xlu0 %v247, 4
        %v319 = vpop.permute.xlu0 %318
        %320 = vrot.lane.b32.xlu0 %v248, 4
        %v321 = vpop.permute.xlu0 %320
        %322 = vrot.lane.b32.xlu0 %v249, 4
        %v323 = vpop.permute.xlu0 %322
        %324 = vrot.lane.b32.xlu0 %v250, 4
        %v325 = vpop.permute.xlu0 %324
        %326 = vrot.lane.b32.xlu0 %v251, 4
        %v327 = vpop.permute.xlu0 %326
        %328 = vrot.lane.b32.xlu0 %v252, 4
        %v329 = vpop.permute.xlu0 %328
        %330 = vrot.lane.b32.xlu0 %v253, 4
        %v331 = vpop.permute.xlu0 %330
        %332 = vrot.lane.b32.xlu0 %v254, 4
        %v333 = vpop.permute.xlu0 %332
        %334 = vrot.lane.b32.xlu0 %v255, 4
        %v335 = vpop.permute.xlu0 %334
        %336 = vrot.lane.b32.xlu0 %v256, 4
        %v337 = vpop.permute.xlu0 %336
        %338 = vrot.lane.b32.xlu0 %v257, 4
        %v339 = vpop.permute.xlu0 %338
        %340 = vrot.lane.b32.xlu0 %v258, 4
        %v341 = vpop.permute.xlu0 %340
        %342 = vrot.lane.b32.xlu0 %v259, 4
        %v343 = vpop.permute.xlu0 %342
        %344 = vrot.lane.b32.xlu0 %v260, 4
        %v345 = vpop.permute.xlu0 %344
        %346 = vrot.lane.b32.xlu0 %v261, 4
        %v347 = vpop.permute.xlu0 %346
        %348 = vrot.lane.b32.xlu0 %v262, 4
        %v349 = vpop.permute.xlu0 %348
        %350 = vrot.lane.b32.xlu0 %v263, 4
        %v351 = vpop.permute.xlu0 %350
        %352 = vrot.lane.b32.xlu0 %v264, 4
        %v353 = vpop.permute.xlu0 %352
        %354 = vrot.lane.b32.xlu0 %v265, 4
        %v355 = vpop.permute.xlu0 %354
        %356 = vrot.lane.b32.xlu0 %v266, 4
        %v357 = vpop.permute.xlu0 %356
        %358 = vrot.lane.b32.xlu0 %v267, 4
        %v359 = vpop.permute.xlu0 %358
        %360 = vrot.lane.b32.xlu0 %v268, 4
        %v361 = vpop.permute.xlu0 %360
        %362 = vrot.lane.b32.xlu0 %v269, 4
        %v363 = vpop.permute.xlu0 %362
        %364 = vrot.lane.b32.xlu0 %v270, 4
        %v365 = vpop.permute.xlu0 %364
        %366 = vrot.lane.b32.xlu0 %v271, 4
        %v367 = vpop.permute.xlu0 %366
        %vm400 = vcmask 64544
        %401 = vst.msk [vmem:[#allocation2] sm:$0xff] %vm400, %v305
        %402 = vst.msk [vmem:[#allocation2 + $0x8] sm:$0xff] %vm400, %v307
        %403 = vst.msk [vmem:[#allocation2 + $0x10] sm:$0xff] %vm400, %v309
        %404 = vst.msk [vmem:[#allocation2 + $0x18] sm:$0xff] %vm400, %v311
        %405 = vst.msk [vmem:[#allocation2 + $0x20] sm:$0xff] %vm400, %v313
        %406 = vst.msk [vmem:[#allocation2 + $0x28] sm:$0xff] %vm400, %v315
        %407 = vst.msk [vmem:[#allocation2 + $0x30] sm:$0xff] %vm400, %v317
        %408 = vst.msk [vmem:[#allocation2 + $0x38] sm:$0xff] %vm400, %v319
        %409 = vst.msk [vmem:[#allocation2 + $0x40] sm:$0xff] %vm400, %v321
        %410 = vst.msk [vmem:[#allocation2 + $0x48] sm:$0xff] %vm400, %v323
        %411 = vst.msk [vmem:[#allocation2 + $0x50] sm:$0xff] %vm400, %v325
        %412 = vst.msk [vmem:[#allocation2 + $0x58] sm:$0xff] %vm400, %v327
        %413 = vst.msk [vmem:[#allocation2 + $0x60] sm:$0xff] %vm400, %v329
        %414 = vst.msk [vmem:[#allocation2 + $0x68] sm:$0xff] %vm400, %v331
        %415 = vst.msk [vmem:[#allocation2 + $0x70] sm:$0xff] %vm400, %v333
        %416 = vst.msk [vmem:[#allocation2 + $0x78] sm:$0xff] %vm400, %v335
        %417 = vst.msk [vmem:[#allocation2 + $0x80] sm:$0xff] %vm400, %v337
        %418 = vst.msk [vmem:[#allocation2 + $0x88] sm:$0xff] %vm400, %v339
        %419 = vst.msk [vmem:[#allocation2 + $0x90] sm:$0xff] %vm400, %v341
        %420 = vst.msk [vmem:[#allocation2 + $0x98] sm:$0xff] %vm400, %v343
        %421 = vst.msk [vmem:[#allocation2 + $0xa0] sm:$0xff] %vm400, %v345
        %422 = vst.msk [vmem:[#allocation2 + $0xa8] sm:$0xff] %vm400, %v347
        %423 = vst.msk [vmem:[#allocation2 + $0xb0] sm:$0xff] %vm400, %v349
        %424 = vst.msk [vmem:[#allocation2 + $0xb8] sm:$0xff] %vm400, %v351
        %425 = vst.msk [vmem:[#allocation2 + $0xc0] sm:$0xff] %vm400, %v353
        %426 = vst.msk [vmem:[#allocation2 + $0xc8] sm:$0xff] %vm400, %v355
        %427 = vst.msk [vmem:[#allocation2 + $0xd0] sm:$0xff] %vm400, %v357
        %428 = vst.msk [vmem:[#allocation2 + $0xd8] sm:$0xff] %vm400, %v359
        %429 = vst.msk [vmem:[#allocation2 + $0xe0] sm:$0xff] %vm400, %v361
        %430 = vst.msk [vmem:[#allocation2 + $0xe8] sm:$0xff] %vm400, %v363
        %431 = vst.msk [vmem:[#allocation2 + $0xf0] sm:$0xff] %vm400, %v365
        %432 = vst.msk [vmem:[#allocation2 + $0xf8] sm:$0xff] %vm400, %v367
        %v433 = vld [vmem:[%s168 + $0x2] sm:$0xff]
        %v434 = vld [vmem:[%s168 + $0xa] sm:$0xff]
        %v435 = vld [vmem:[%s168 + $0x1a] sm:$0xff]
        %v436 = vld [vmem:[%s168 + $0x22] sm:$0xff]
        %v437 = vld [vmem:[%s168 + $0x32] sm:$0xff]
        %v438 = vld [vmem:[%s168 + $0x3a] sm:$0xff]
        %v439 = vld [vmem:[%s168 + $0x4a] sm:$0xff]
        %v440 = vld [vmem:[%s168 + $0x52] sm:$0xff]
        %v441 = vld [vmem:[%s168 + $0x62] sm:$0xff]
        %v442 = vld [vmem:[%s168 + $0x6a] sm:$0xff]
        %v443 = vld [vmem:[%s168 + $0x7a] sm:$0xff]
        %v444 = vld [vmem:[%s168 + $0x82] sm:$0xff]
        %v445 = vld [vmem:[%s168 + $0x92] sm:$0xff]
        %v446 = vld [vmem:[%s168 + $0x9a] sm:$0xff]
        %v447 = vld [vmem:[%s168 + $0xaa] sm:$0xff]
        %v448 = vld [vmem:[%s168 + $0xb2] sm:$0xff]
        %v449 = vld [vmem:[%s168 + $0xc2] sm:$0xff]
        %v450 = vld [vmem:[%s168 + $0xca] sm:$0xff]
        %v451 = vld [vmem:[%s168 + $0xda] sm:$0xff]
        %v452 = vld [vmem:[%s168 + $0xe2] sm:$0xff]
        %v453 = vld [vmem:[%s168 + $0xf2] sm:$0xff]
        %v454 = vld [vmem:[%s168 + $0xfa] sm:$0xff]
        %v455 = vld [vmem:[%s168 + $0x10a] sm:$0xff]
        %v456 = vld [vmem:[%s168 + $0x112] sm:$0xff]
        %v457 = vld [vmem:[%s168 + $0x122] sm:$0xff]
        %v458 = vld [vmem:[%s168 + $0x12a] sm:$0xff]
        %v459 = vld [vmem:[%s168 + $0x13a] sm:$0xff]
        %v460 = vld [vmem:[%s168 + $0x142] sm:$0xff]
        %v461 = vld [vmem:[%s168 + $0x152] sm:$0xff]
        %v462 = vld [vmem:[%s168 + $0x15a] sm:$0xff]
        %v463 = vld [vmem:[%s168 + $0x16a] sm:$0xff]
        %v464 = vld [vmem:[%s168 + $0x172] sm:$0xff]
        %497 = vrot.lane.b32.xlu0 %v433, 8
        %v498 = vpop.permute.xlu0 %497
        %499 = vrot.lane.b32.xlu0 %v434, 8
        %v500 = vpop.permute.xlu0 %499
        %501 = vrot.lane.b32.xlu0 %v435, 8
        %v502 = vpop.permute.xlu0 %501
        %503 = vrot.lane.b32.xlu0 %v436, 8
        %v504 = vpop.permute.xlu0 %503
        %505 = vrot.lane.b32.xlu0 %v437, 8
        %v506 = vpop.permute.xlu0 %505
        %507 = vrot.lane.b32.xlu0 %v438, 8
        %v508 = vpop.permute.xlu0 %507
        %509 = vrot.lane.b32.xlu0 %v439, 8
        %v510 = vpop.permute.xlu0 %509
        %511 = vrot.lane.b32.xlu0 %v440, 8
        %v512 = vpop.permute.xlu0 %511
        %513 = vrot.lane.b32.xlu0 %v441, 8
        %v514 = vpop.permute.xlu0 %513
        %515 = vrot.lane.b32.xlu0 %v442, 8
        %v516 = vpop.permute.xlu0 %515
        %517 = vrot.lane.b32.xlu0 %v443, 8
        %v518 = vpop.permute.xlu0 %517
        %519 = vrot.lane.b32.xlu0 %v444, 8
        %v520 = vpop.permute.xlu0 %519
        %521 = vrot.lane.b32.xlu0 %v445, 8
        %v522 = vpop.permute.xlu0 %521
        %523 = vrot.lane.b32.xlu0 %v446, 8
        %v524 = vpop.permute.xlu0 %523
        %525 = vrot.lane.b32.xlu0 %v447, 8
        %v526 = vpop.permute.xlu0 %525
        %527 = vrot.lane.b32.xlu0 %v448, 8
        %v528 = vpop.permute.xlu0 %527
        %529 = vrot.lane.b32.xlu0 %v449, 8
        %v530 = vpop.permute.xlu0 %529
        %531 = vrot.lane.b32.xlu0 %v450, 8
        %v532 = vpop.permute.xlu0 %531
        %533 = vrot.lane.b32.xlu0 %v451, 8
        %v534 = vpop.permute.xlu0 %533
        %535 = vrot.lane.b32.xlu0 %v452, 8
        %v536 = vpop.permute.xlu0 %535
        %537 = vrot.lane.b32.xlu0 %v453, 8
        %v538 = vpop.permute.xlu0 %537
        %539 = vrot.lane.b32.xlu0 %v454, 8
        %v540 = vpop.permute.xlu0 %539
        %541 = vrot.lane.b32.xlu0 %v455, 8
        %v542 = vpop.permute.xlu0 %541
        %543 = vrot.lane.b32.xlu0 %v456, 8
        %v544 = vpop.permute.xlu0 %543
        %545 = vrot.lane.b32.xlu0 %v457, 8
        %v546 = vpop.permute.xlu0 %545
        %547 = vrot.lane.b32.xlu0 %v458, 8
        %v548 = vpop.permute.xlu0 %547
        %549 = vrot.lane.b32.xlu0 %v459, 8
        %v550 = vpop.permute.xlu0 %549
        %551 = vrot.lane.b32.xlu0 %v460, 8
        %v552 = vpop.permute.xlu0 %551
        %553 = vrot.lane.b32.xlu0 %v461, 8
        %v554 = vpop.permute.xlu0 %553
        %555 = vrot.lane.b32.xlu0 %v462, 8
        %v556 = vpop.permute.xlu0 %555
        %557 = vrot.lane.b32.xlu0 %v463, 8
        %v558 = vpop.permute.xlu0 %557
        %559 = vrot.lane.b32.xlu0 %v464, 8
        %v560 = vpop.permute.xlu0 %559
        %vm593 = vcmask 97344
        %594 = vst.msk [vmem:[#allocation2] sm:$0xff] %vm593, %v498
        %595 = vst.msk [vmem:[#allocation2 + $0x8] sm:$0xff] %vm593, %v500
        %596 = vst.msk [vmem:[#allocation2 + $0x10] sm:$0xff] %vm593, %v502
        %597 = vst.msk [vmem:[#allocation2 + $0x18] sm:$0xff] %vm593, %v504
        %598 = vst.msk [vmem:[#allocation2 + $0x20] sm:$0xff] %vm593, %v506
        %599 = vst.msk [vmem:[#allocation2 + $0x28] sm:$0xff] %vm593, %v508
        %600 = vst.msk [vmem:[#allocation2 + $0x30] sm:$0xff] %vm593, %v510
        %601 = vst.msk [vmem:[#allocation2 + $0x38] sm:$0xff] %vm593, %v512
        %602 = vst.msk [vmem:[#allocation2 + $0x40] sm:$0xff] %vm593, %v514
        %603 = vst.msk [vmem:[#allocation2 + $0x48] sm:$0xff] %vm593, %v516
        %604 = vst.msk [vmem:[#allocation2 + $0x50] sm:$0xff] %vm593, %v518
        %605 = vst.msk [vmem:[#allocation2 + $0x58] sm:$0xff] %vm593, %v520
        %606 = vst.msk [vmem:[#allocation2 + $0x60] sm:$0xff] %vm593, %v522
        %607 = vst.msk [vmem:[#allocation2 + $0x68] sm:$0xff] %vm593, %v524
        %608 = vst.msk [vmem:[#allocation2 + $0x70] sm:$0xff] %vm593, %v526
        %609 = vst.msk [vmem:[#allocation2 + $0x78] sm:$0xff] %vm593, %v528
        %610 = vst.msk [vmem:[#allocation2 + $0x80] sm:$0xff] %vm593, %v530
        %611 = vst.msk [vmem:[#allocation2 + $0x88] sm:$0xff] %vm593, %v532
        %612 = vst.msk [vmem:[#allocation2 + $0x90] sm:$0xff] %vm593, %v534
        %613 = vst.msk [vmem:[#allocation2 + $0x98] sm:$0xff] %vm593, %v536
        %614 = vst.msk [vmem:[#allocation2 + $0xa0] sm:$0xff] %vm593, %v538
        %615 = vst.msk [vmem:[#allocation2 + $0xa8] sm:$0xff] %vm593, %v540
        %616 = vst.msk [vmem:[#allocation2 + $0xb0] sm:$0xff] %vm593, %v542
        %617 = vst.msk [vmem:[#allocation2 + $0xb8] sm:$0xff] %vm593, %v544
        %618 = vst.msk [vmem:[#allocation2 + $0xc0] sm:$0xff] %vm593, %v546
        %619 = vst.msk [vmem:[#allocation2 + $0xc8] sm:$0xff] %vm593, %v548
        %620 = vst.msk [vmem:[#allocation2 + $0xd0] sm:$0xff] %vm593, %v550
        %621 = vst.msk [vmem:[#allocation2 + $0xd8] sm:$0xff] %vm593, %v552
        %622 = vst.msk [vmem:[#allocation2 + $0xe0] sm:$0xff] %vm593, %v554
        %623 = vst.msk [vmem:[#allocation2 + $0xe8] sm:$0xff] %vm593, %v556
        %624 = vst.msk [vmem:[#allocation2 + $0xf0] sm:$0xff] %vm593, %v558
        %625 = vst.msk [vmem:[#allocation2 + $0xf8] sm:$0xff] %vm593, %v560
        %s626 = scalar_lea.vmem %s168, 24
        %v627 = vld [vmem:[%s626] sm:$0xff]
        %v628 = vld [vmem:[%s626 + $0x8] sm:$0xff]
        %v629 = vld [vmem:[%s626 + $0x18] sm:$0xff]
        %v630 = vld [vmem:[%s626 + $0x20] sm:$0xff]
        %v631 = vld [vmem:[%s626 + $0x30] sm:$0xff]
        %v632 = vld [vmem:[%s626 + $0x38] sm:$0xff]
        %v633 = vld [vmem:[%s626 + $0x48] sm:$0xff]
        %v634 = vld [vmem:[%s626 + $0x50] sm:$0xff]
        %v635 = vld [vmem:[%s626 + $0x60] sm:$0xff]
        %v636 = vld [vmem:[%s626 + $0x68] sm:$0xff]
        %v637 = vld [vmem:[%s626 + $0x78] sm:$0xff]
        %v638 = vld [vmem:[%s626 + $0x80] sm:$0xff]
        %v639 = vld [vmem:[%s626 + $0x90] sm:$0xff]
        %v640 = vld [vmem:[%s626 + $0x98] sm:$0xff]
        %v641 = vld [vmem:[%s626 + $0xa8] sm:$0xff]
        %v642 = vld [vmem:[%s626 + $0xb0] sm:$0xff]
        %v643 = vld [vmem:[%s626 + $0xc0] sm:$0xff]
        %v644 = vld [vmem:[%s626 + $0xc8] sm:$0xff]
        %v645 = vld [vmem:[%s626 + $0xd8] sm:$0xff]
        %v646 = vld [vmem:[%s626 + $0xe0] sm:$0xff]
        %v647 = vld [vmem:[%s626 + $0xf0] sm:$0xff]
        %v648 = vld [vmem:[%s626 + $0xf8] sm:$0xff]
        %v649 = vld [vmem:[%s626 + $0x108] sm:$0xff]
        %v650 = vld [vmem:[%s626 + $0x110] sm:$0xff]
        %v651 = vld [vmem:[%s626 + $0x120] sm:$0xff]
        %v652 = vld [vmem:[%s626 + $0x128] sm:$0xff]
        %v653 = vld [vmem:[%s626 + $0x138] sm:$0xff]
        %v654 = vld [vmem:[%s626 + $0x140] sm:$0xff]
        %v655 = vld [vmem:[%s626 + $0x150] sm:$0xff]
        %v656 = vld [vmem:[%s626 + $0x158] sm:$0xff]
        %v657 = vld [vmem:[%s626 + $0x168] sm:$0xff]
        %v658 = vld [vmem:[%s626 + $0x170] sm:$0xff]
        %691 = vrot.lane.b32.xlu0 %v627, 12
        %v692 = vpop.permute.xlu0 %691
        %693 = vrot.lane.b32.xlu0 %v628, 12
        %v694 = vpop.permute.xlu0 %693
        %695 = vrot.lane.b32.xlu0 %v629, 12
        %v696 = vpop.permute.xlu0 %695
        %697 = vrot.lane.b32.xlu0 %v630, 12
        %v698 = vpop.permute.xlu0 %697
        %699 = vrot.lane.b32.xlu0 %v631, 12
        %v700 = vpop.permute.xlu0 %699
        %701 = vrot.lane.b32.xlu0 %v632, 12
        %v702 = vpop.permute.xlu0 %701
        %703 = vrot.lane.b32.xlu0 %v633, 12
        %v704 = vpop.permute.xlu0 %703
        %705 = vrot.lane.b32.xlu0 %v634, 12
        %v706 = vpop.permute.xlu0 %705
        %707 = vrot.lane.b32.xlu0 %v635, 12
        %v708 = vpop.permute.xlu0 %707
        %709 = vrot.lane.b32.xlu0 %v636, 12
        %v710 = vpop.permute.xlu0 %709
        %711 = vrot.lane.b32.xlu0 %v637, 12
        %v712 = vpop.permute.xlu0 %711
        %713 = vrot.lane.b32.xlu0 %v638, 12
        %v714 = vpop.permute.xlu0 %713
        %715 = vrot.lane.b32.xlu0 %v639, 12
        %v716 = vpop.permute.xlu0 %715
        %717 = vrot.lane.b32.xlu0 %v640, 12
        %v718 = vpop.permute.xlu0 %717
        %719 = vrot.lane.b32.xlu0 %v641, 12
        %v720 = vpop.permute.xlu0 %719
        %721 = vrot.lane.b32.xlu0 %v642, 12
        %v722 = vpop.permute.xlu0 %721
        %723 = vrot.lane.b32.xlu0 %v643, 12
        %v724 = vpop.permute.xlu0 %723
        %725 = vrot.lane.b32.xlu0 %v644, 12
        %v726 = vpop.permute.xlu0 %725
        %727 = vrot.lane.b32.xlu0 %v645, 12
        %v728 = vpop.permute.xlu0 %727
        %729 = vrot.lane.b32.xlu0 %v646, 12
        %v730 = vpop.permute.xlu0 %729
        %731 = vrot.lane.b32.xlu0 %v647, 12
        %v732 = vpop.permute.xlu0 %731
        %733 = vrot.lane.b32.xlu0 %v648, 12
        %v734 = vpop.permute.xlu0 %733
        %735 = vrot.lane.b32.xlu0 %v649, 12
        %v736 = vpop.permute.xlu0 %735
        %737 = vrot.lane.b32.xlu0 %v650, 12
        %v738 = vpop.permute.xlu0 %737
        %739 = vrot.lane.b32.xlu0 %v651, 12
        %v740 = vpop.permute.xlu0 %739
        %741 = vrot.lane.b32.xlu0 %v652, 12
        %v742 = vpop.permute.xlu0 %741
        %743 = vrot.lane.b32.xlu0 %v653, 12
        %v744 = vpop.permute.xlu0 %743
        %745 = vrot.lane.b32.xlu0 %v654, 12
        %v746 = vpop.permute.xlu0 %745
        %747 = vrot.lane.b32.xlu0 %v655, 12
        %v748 = vpop.permute.xlu0 %747
        %749 = vrot.lane.b32.xlu0 %v656, 12
        %v750 = vpop.permute.xlu0 %749
        %751 = vrot.lane.b32.xlu0 %v657, 12
        %v752 = vpop.permute.xlu0 %751
        %753 = vrot.lane.b32.xlu0 %v658, 12
        %v754 = vpop.permute.xlu0 %753
        %vm787 = vcmask 130144
        %788 = vst.msk [vmem:[#allocation2] sm:$0xff] %vm787, %v692
        %789 = vst.msk [vmem:[#allocation2 + $0x8] sm:$0xff] %vm787, %v694
        %790 = vst.msk [vmem:[#allocation2 + $0x10] sm:$0xff] %vm787, %v696
        %791 = vst.msk [vmem:[#allocation2 + $0x18] sm:$0xff] %vm787, %v698
        %792 = vst.msk [vmem:[#allocation2 + $0x20] sm:$0xff] %vm787, %v700
        %793 = vst.msk [vmem:[#allocation2 + $0x28] sm:$0xff] %vm787, %v702
        %794 = vst.msk [vmem:[#allocation2 + $0x30] sm:$0xff] %vm787, %v704
        %795 = vst.msk [vmem:[#allocation2 + $0x38] sm:$0xff] %vm787, %v706
        %796 = vst.msk [vmem:[#allocation2 + $0x40] sm:$0xff] %vm787, %v708
        %797 = vst.msk [vmem:[#allocation2 + $0x48] sm:$0xff] %vm787, %v710
        %798 = vst.msk [vmem:[#allocation2 + $0x50] sm:$0xff] %vm787, %v712
        %799 = vst.msk [vmem:[#allocation2 + $0x58] sm:$0xff] %vm787, %v714
        %800 = vst.msk [vmem:[#allocation2 + $0x60] sm:$0xff] %vm787, %v716
        %801 = vst.msk [vmem:[#allocation2 + $0x68] sm:$0xff] %vm787, %v718
        %802 = vst.msk [vmem:[#allocation2 + $0x70] sm:$0xff] %vm787, %v720
        %803 = vst.msk [vmem:[#allocation2 + $0x78] sm:$0xff] %vm787, %v722
        %804 = vst.msk [vmem:[#allocation2 + $0x80] sm:$0xff] %vm787, %v724
        %805 = vst.msk [vmem:[#allocation2 + $0x88] sm:$0xff] %vm787, %v726
        %806 = vst.msk [vmem:[#allocation2 + $0x90] sm:$0xff] %vm787, %v728
        %807 = vst.msk [vmem:[#allocation2 + $0x98] sm:$0xff] %vm787, %v730
        %808 = vst.msk [vmem:[#allocation2 + $0xa0] sm:$0xff] %vm787, %v732
        %809 = vst.msk [vmem:[#allocation2 + $0xa8] sm:$0xff] %vm787, %v734
        %810 = vst.msk [vmem:[#allocation2 + $0xb0] sm:$0xff] %vm787, %v736
        %811 = vst.msk [vmem:[#allocation2 + $0xb8] sm:$0xff] %vm787, %v738
        %812 = vst.msk [vmem:[#allocation2 + $0xc0] sm:$0xff] %vm787, %v740
        %813 = vst.msk [vmem:[#allocation2 + $0xc8] sm:$0xff] %vm787, %v742
        %814 = vst.msk [vmem:[#allocation2 + $0xd0] sm:$0xff] %vm787, %v744
        %815 = vst.msk [vmem:[#allocation2 + $0xd8] sm:$0xff] %vm787, %v746
        %816 = vst.msk [vmem:[#allocation2 + $0xe0] sm:$0xff] %vm787, %v748
        %817 = vst.msk [vmem:[#allocation2 + $0xe8] sm:$0xff] %vm787, %v750
        %818 = vst.msk [vmem:[#allocation2 + $0xf0] sm:$0xff] %vm787, %v752
        %819 = vst.msk [vmem:[#allocation2 + $0xf8] sm:$0xff] %vm787, %v754
        %v820 = vld [vmem:[%s626 + $0x1] sm:$0xff]
        %v821 = vld [vmem:[%s626 + $0x9] sm:$0xff]
        %v822 = vld [vmem:[%s626 + $0x19] sm:$0xff]
        %v823 = vld [vmem:[%s626 + $0x21] sm:$0xff]
        %v824 = vld [vmem:[%s626 + $0x31] sm:$0xff]
        %v825 = vld [vmem:[%s626 + $0x39] sm:$0xff]
        %v826 = vld [vmem:[%s626 + $0x49] sm:$0xff]
        %v827 = vld [vmem:[%s626 + $0x51] sm:$0xff]
        %v828 = vld [vmem:[%s626 + $0x61] sm:$0xff]
        %v829 = vld [vmem:[%s626 + $0x69] sm:$0xff]
        %v830 = vld [vmem:[%s626 + $0x79] sm:$0xff]
        %v831 = vld [vmem:[%s626 + $0x81] sm:$0xff]
        %v832 = vld [vmem:[%s626 + $0x91] sm:$0xff]
        %v833 = vld [vmem:[%s626 + $0x99] sm:$0xff]
        %v834 = vld [vmem:[%s626 + $0xa9] sm:$0xff]
        %v835 = vld [vmem:[%s626 + $0xb1] sm:$0xff]
        %v836 = vld [vmem:[%s626 + $0xc1] sm:$0xff]
        %v837 = vld [vmem:[%s626 + $0xc9] sm:$0xff]
        %v838 = vld [vmem:[%s626 + $0xd9] sm:$0xff]
        %v839 = vld [vmem:[%s626 + $0xe1] sm:$0xff]
        %v840 = vld [vmem:[%s626 + $0xf1] sm:$0xff]
        %v841 = vld [vmem:[%s626 + $0xf9] sm:$0xff]
        %v842 = vld [vmem:[%s626 + $0x109] sm:$0xff]
        %v843 = vld [vmem:[%s626 + $0x111] sm:$0xff]
        %v844 = vld [vmem:[%s626 + $0x121] sm:$0xff]
        %v845 = vld [vmem:[%s626 + $0x129] sm:$0xff]
        %v846 = vld [vmem:[%s626 + $0x139] sm:$0xff]
        %v847 = vld [vmem:[%s626 + $0x141] sm:$0xff]
        %v848 = vld [vmem:[%s626 + $0x151] sm:$0xff]
        %v849 = vld [vmem:[%s626 + $0x159] sm:$0xff]
        %v850 = vld [vmem:[%s626 + $0x169] sm:$0xff]
        %v851 = vld [vmem:[%s626 + $0x171] sm:$0xff]
        %884 = vrot.lane.b32.xlu0 %v820, 16
        %v885 = vpop.permute.xlu0 %884
        %886 = vrot.lane.b32.xlu0 %v821, 16
        %v887 = vpop.permute.xlu0 %886
        %888 = vrot.lane.b32.xlu0 %v822, 16
        %v889 = vpop.permute.xlu0 %888
        %890 = vrot.lane.b32.xlu0 %v823, 16
        %v891 = vpop.permute.xlu0 %890
        %892 = vrot.lane.b32.xlu0 %v824, 16
        %v893 = vpop.permute.xlu0 %892
        %894 = vrot.lane.b32.xlu0 %v825, 16
        %v895 = vpop.permute.xlu0 %894
        %896 = vrot.lane.b32.xlu0 %v826, 16
        %v897 = vpop.permute.xlu0 %896
        %898 = vrot.lane.b32.xlu0 %v827, 16
        %v899 = vpop.permute.xlu0 %898
        %900 = vrot.lane.b32.xlu0 %v828, 16
        %v901 = vpop.permute.xlu0 %900
        %902 = vrot.lane.b32.xlu0 %v829, 16
        %v903 = vpop.permute.xlu0 %902
        %904 = vrot.lane.b32.xlu0 %v830, 16
        %v905 = vpop.permute.xlu0 %904
        %906 = vrot.lane.b32.xlu0 %v831, 16
        %v907 = vpop.permute.xlu0 %906
        %908 = vrot.lane.b32.xlu0 %v832, 16
        %v909 = vpop.permute.xlu0 %908
        %910 = vrot.lane.b32.xlu0 %v833, 16
        %v911 = vpop.permute.xlu0 %910
        %912 = vrot.lane.b32.xlu0 %v834, 16
        %v913 = vpop.permute.xlu0 %912
        %914 = vrot.lane.b32.xlu0 %v835, 16
        %v915 = vpop.permute.xlu0 %914
        %916 = vrot.lane.b32.xlu0 %v836, 16
        %v917 = vpop.permute.xlu0 %916
        %918 = vrot.lane.b32.xlu0 %v837, 16
        %v919 = vpop.permute.xlu0 %918
        %920 = vrot.lane.b32.xlu0 %v838, 16
        %v921 = vpop.permute.xlu0 %920
        %922 = vrot.lane.b32.xlu0 %v839, 16
        %v923 = vpop.permute.xlu0 %922
        %924 = vrot.lane.b32.xlu0 %v840, 16
        %v925 = vpop.permute.xlu0 %924
        %926 = vrot.lane.b32.xlu0 %v841, 16
        %v927 = vpop.permute.xlu0 %926
        %928 = vrot.lane.b32.xlu0 %v842, 16
        %v929 = vpop.permute.xlu0 %928
        %930 = vrot.lane.b32.xlu0 %v843, 16
        %v931 = vpop.permute.xlu0 %930
        %932 = vrot.lane.b32.xlu0 %v844, 16
        %v933 = vpop.permute.xlu0 %932
        %934 = vrot.lane.b32.xlu0 %v845, 16
        %v935 = vpop.permute.xlu0 %934
        %936 = vrot.lane.b32.xlu0 %v846, 16
        %v937 = vpop.permute.xlu0 %936
        %938 = vrot.lane.b32.xlu0 %v847, 16
        %v939 = vpop.permute.xlu0 %938
        %940 = vrot.lane.b32.xlu0 %v848, 16
        %v941 = vpop.permute.xlu0 %940
        %942 = vrot.lane.b32.xlu0 %v849, 16
        %v943 = vpop.permute.xlu0 %942
        %944 = vrot.lane.b32.xlu0 %v850, 16
        %v945 = vpop.permute.xlu0 %944
        %946 = vrot.lane.b32.xlu0 %v851, 16
        %v947 = vpop.permute.xlu0 %946
        %vm980 = vcmask 162944
        %981 = vst.msk [vmem:[#allocation2] sm:$0xff] %vm980, %v885
        %982 = vst.msk [vmem:[#allocation2 + $0x8] sm:$0xff] %vm980, %v887
        %983 = vst.msk [vmem:[#allocation2 + $0x10] sm:$0xff] %vm980, %v889
        %984 = vst.msk [vmem:[#allocation2 + $0x18] sm:$0xff] %vm980, %v891
        %985 = vst.msk [vmem:[#allocation2 + $0x20] sm:$0xff] %vm980, %v893
        %986 = vst.msk [vmem:[#allocation2 + $0x28] sm:$0xff] %vm980, %v895
        %987 = vst.msk [vmem:[#allocation2 + $0x30] sm:$0xff] %vm980, %v897
        %988 = vst.msk [vmem:[#allocation2 + $0x38] sm:$0xff] %vm980, %v899
        %989 = vst.msk [vmem:[#allocation2 + $0x40] sm:$0xff] %vm980, %v901
        %990 = vst.msk [vmem:[#allocation2 + $0x48] sm:$0xff] %vm980, %v903
        %991 = vst.msk [vmem:[#allocation2 + $0x50] sm:$0xff] %vm980, %v905
        %992 = vst.msk [vmem:[#allocation2 + $0x58] sm:$0xff] %vm980, %v907
        %993 = vst.msk [vmem:[#allocation2 + $0x60] sm:$0xff] %vm980, %v909
        %994 = vst.msk [vmem:[#allocation2 + $0x68] sm:$0xff] %vm980, %v911
        %995 = vst.msk [vmem:[#allocation2 + $0x70] sm:$0xff] %vm980, %v913
        %996 = vst.msk [vmem:[#allocation2 + $0x78] sm:$0xff] %vm980, %v915
        %997 = vst.msk [vmem:[#allocation2 + $0x80] sm:$0xff] %vm980, %v917
        %998 = vst.msk [vmem:[#allocation2 + $0x88] sm:$0xff] %vm980, %v919
        %999 = vst.msk [vmem:[#allocation2 + $0x90] sm:$0xff] %vm980, %v921
        %1000 = vst.msk [vmem:[#allocation2 + $0x98] sm:$0xff] %vm980, %v923
        %1001 = vst.msk [vmem:[#allocation2 + $0xa0] sm:$0xff] %vm980, %v925
        %1002 = vst.msk [vmem:[#allocation2 + $0xa8] sm:$0xff] %vm980, %v927
        %1003 = vst.msk [vmem:[#allocation2 + $0xb0] sm:$0xff] %vm980, %v929
        %1004 = vst.msk [vmem:[#allocation2 + $0xb8] sm:$0xff] %vm980, %v931
        %1005 = vst.msk [vmem:[#allocation2 + $0xc0] sm:$0xff] %vm980, %v933
        %1006 = vst.msk [vmem:[#allocation2 + $0xc8] sm:$0xff] %vm980, %v935
        %1007 = vst.msk [vmem:[#allocation2 + $0xd0] sm:$0xff] %vm980, %v937
        %1008 = vst.msk [vmem:[#allocation2 + $0xd8] sm:$0xff] %vm980, %v939
        %1009 = vst.msk [vmem:[#allocation2 + $0xe0] sm:$0xff] %vm980, %v941
        %1010 = vst.msk [vmem:[#allocation2 + $0xe8] sm:$0xff] %vm980, %v943
        %1011 = vst.msk [vmem:[#allocation2 + $0xf0] sm:$0xff] %vm980, %v945
        %1012 = vst.msk [vmem:[#allocation2 + $0xf8] sm:$0xff] %vm980, %v947
        %v1013 = vld [vmem:[%s626 + $0x2] sm:$0xff]
        %v1014 = vld [vmem:[%s626 + $0xa] sm:$0xff]
        %v1015 = vld [vmem:[%s626 + $0x1a] sm:$0xff]
        %v1016 = vld [vmem:[%s626 + $0x22] sm:$0xff]
        %v1017 = vld [vmem:[%s626 + $0x32] sm:$0xff]
        %v1018 = vld [vmem:[%s626 + $0x3a] sm:$0xff]
        %v1019 = vld [vmem:[%s626 + $0x4a] sm:$0xff]
        %v1020 = vld [vmem:[%s626 + $0x52] sm:$0xff]
        %v1021 = vld [vmem:[%s626 + $0x62] sm:$0xff]
        %v1022 = vld [vmem:[%s626 + $0x6a] sm:$0xff]
        %v1023 = vld [vmem:[%s626 + $0x7a] sm:$0xff]
        %v1024 = vld [vmem:[%s626 + $0x82] sm:$0xff]
        %v1025 = vld [vmem:[%s626 + $0x92] sm:$0xff]
        %v1026 = vld [vmem:[%s626 + $0x9a] sm:$0xff]
        %v1027 = vld [vmem:[%s626 + $0xaa] sm:$0xff]
        %v1028 = vld [vmem:[%s626 + $0xb2] sm:$0xff]
        %v1029 = vld [vmem:[%s626 + $0xc2] sm:$0xff]
        %v1030 = vld [vmem:[%s626 + $0xca] sm:$0xff]
        %v1031 = vld [vmem:[%s626 + $0xda] sm:$0xff]
        %v1032 = vld [vmem:[%s626 + $0xe2] sm:$0xff]
        %v1033 = vld [vmem:[%s626 + $0xf2] sm:$0xff]
        %v1034 = vld [vmem:[%s626 + $0xfa] sm:$0xff]
        %v1035 = vld [vmem:[%s626 + $0x10a] sm:$0xff]
        %v1036 = vld [vmem:[%s626 + $0x112] sm:$0xff]
        %v1037 = vld [vmem:[%s626 + $0x122] sm:$0xff]
        %v1038 = vld [vmem:[%s626 + $0x12a] sm:$0xff]
        %v1039 = vld [vmem:[%s626 + $0x13a] sm:$0xff]
        %v1040 = vld [vmem:[%s626 + $0x142] sm:$0xff]
        %v1041 = vld [vmem:[%s626 + $0x152] sm:$0xff]
        %v1042 = vld [vmem:[%s626 + $0x15a] sm:$0xff]
        %v1043 = vld [vmem:[%s626 + $0x16a] sm:$0xff]
        %v1044 = vld [vmem:[%s626 + $0x172] sm:$0xff]
        %1077 = vrot.lane.b32.xlu0 %v1013, 20
        %v1078 = vpop.permute.xlu0 %1077
        %1079 = vrot.lane.b32.xlu0 %v1014, 20
        %v1080 = vpop.permute.xlu0 %1079
        %1081 = vrot.lane.b32.xlu0 %v1015, 20
        %v1082 = vpop.permute.xlu0 %1081
        %1083 = vrot.lane.b32.xlu0 %v1016, 20
        %v1084 = vpop.permute.xlu0 %1083
        %1085 = vrot.lane.b32.xlu0 %v1017, 20
        %v1086 = vpop.permute.xlu0 %1085
        %1087 = vrot.lane.b32.xlu0 %v1018, 20
        %v1088 = vpop.permute.xlu0 %1087
        %1089 = vrot.lane.b32.xlu0 %v1019, 20
        %v1090 = vpop.permute.xlu0 %1089
        %1091 = vrot.lane.b32.xlu0 %v1020, 20
        %v1092 = vpop.permute.xlu0 %1091
        %1093 = vrot.lane.b32.xlu0 %v1021, 20
        %v1094 = vpop.permute.xlu0 %1093
        %1095 = vrot.lane.b32.xlu0 %v1022, 20
        %v1096 = vpop.permute.xlu0 %1095
        %1097 = vrot.lane.b32.xlu0 %v1023, 20
        %v1098 = vpop.permute.xlu0 %1097
        %1099 = vrot.lane.b32.xlu0 %v1024, 20
        %v1100 = vpop.permute.xlu0 %1099
        %1101 = vrot.lane.b32.xlu0 %v1025, 20
        %v1102 = vpop.permute.xlu0 %1101
        %1103 = vrot.lane.b32.xlu0 %v1026, 20
        %v1104 = vpop.permute.xlu0 %1103
        %1105 = vrot.lane.b32.xlu0 %v1027, 20
        %v1106 = vpop.permute.xlu0 %1105
        %1107 = vrot.lane.b32.xlu0 %v1028, 20
        %v1108 = vpop.permute.xlu0 %1107
        %1109 = vrot.lane.b32.xlu0 %v1029, 20
        %v1110 = vpop.permute.xlu0 %1109
        %1111 = vrot.lane.b32.xlu0 %v1030, 20
        %v1112 = vpop.permute.xlu0 %1111
        %1113 = vrot.lane.b32.xlu0 %v1031, 20
        %v1114 = vpop.permute.xlu0 %1113
        %1115 = vrot.lane.b32.xlu0 %v1032, 20
        %v1116 = vpop.permute.xlu0 %1115
        %1117 = vrot.lane.b32.xlu0 %v1033, 20
        %v1118 = vpop.permute.xlu0 %1117
        %1119 = vrot.lane.b32.xlu0 %v1034, 20
        %v1120 = vpop.permute.xlu0 %1119
        %1121 = vrot.lane.b32.xlu0 %v1035, 20
        %v1122 = vpop.permute.xlu0 %1121
        %1123 = vrot.lane.b32.xlu0 %v1036, 20
        %v1124 = vpop.permute.xlu0 %1123
        %1125 = vrot.lane.b32.xlu0 %v1037, 20
        %v1126 = vpop.permute.xlu0 %1125
        %1127 = vrot.lane.b32.xlu0 %v1038, 20
        %v1128 = vpop.permute.xlu0 %1127
        %1129 = vrot.lane.b32.xlu0 %v1039, 20
        %v1130 = vpop.permute.xlu0 %1129
        %1131 = vrot.lane.b32.xlu0 %v1040, 20
        %v1132 = vpop.permute.xlu0 %1131
        %1133 = vrot.lane.b32.xlu0 %v1041, 20
        %v1134 = vpop.permute.xlu0 %1133
        %1135 = vrot.lane.b32.xlu0 %v1042, 20
        %v1136 = vpop.permute.xlu0 %1135
        %1137 = vrot.lane.b32.xlu0 %v1043, 20
        %v1138 = vpop.permute.xlu0 %1137
        %1139 = vrot.lane.b32.xlu0 %v1044, 20
        %v1140 = vpop.permute.xlu0 %1139
        %vm1173 = vcmask 195744
        %1174 = vst.msk [vmem:[#allocation2] sm:$0xff] %vm1173, %v1078
        %1175 = vst.msk [vmem:[#allocation2 + $0x8] sm:$0xff] %vm1173, %v1080
        %1176 = vst.msk [vmem:[#allocation2 + $0x10] sm:$0xff] %vm1173, %v1082
        %1177 = vst.msk [vmem:[#allocation2 + $0x18] sm:$0xff] %vm1173, %v1084
        %1178 = vst.msk [vmem:[#allocation2 + $0x20] sm:$0xff] %vm1173, %v1086
        %1179 = vst.msk [vmem:[#allocation2 + $0x28] sm:$0xff] %vm1173, %v1088
        %1180 = vst.msk [vmem:[#allocation2 + $0x30] sm:$0xff] %vm1173, %v1090
        %1181 = vst.msk [vmem:[#allocation2 + $0x38] sm:$0xff] %vm1173, %v1092
        %1182 = vst.msk [vmem:[#allocation2 + $0x40] sm:$0xff] %vm1173, %v1094
        %1183 = vst.msk [vmem:[#allocation2 + $0x48] sm:$0xff] %vm1173, %v1096
        %1184 = vst.msk [vmem:[#allocation2 + $0x50] sm:$0xff] %vm1173, %v1098
        %1185 = vst.msk [vmem:[#allocation2 + $0x58] sm:$0xff] %vm1173, %v1100
        %1186 = vst.msk [vmem:[#allocation2 + $0x60] sm:$0xff] %vm1173, %v1102
        %1187 = vst.msk [vmem:[#allocation2 + $0x68] sm:$0xff] %vm1173, %v1104
        %1188 = vst.msk [vmem:[#allocation2 + $0x70] sm:$0xff] %vm1173, %v1106
        %1189 = vst.msk [vmem:[#allocation2 + $0x78] sm:$0xff] %vm1173, %v1108
        %1190 = vst.msk [vmem:[#allocation2 + $0x80] sm:$0xff] %vm1173, %v1110
        %1191 = vst.msk [vmem:[#allocation2 + $0x88] sm:$0xff] %vm1173, %v1112
        %1192 = vst.msk [vmem:[#allocation2 + $0x90] sm:$0xff] %vm1173, %v1114
        %1193 = vst.msk [vmem:[#allocation2 + $0x98] sm:$0xff] %vm1173, %v1116
        %1194 = vst.msk [vmem:[#allocation2 + $0xa0] sm:$0xff] %vm1173, %v1118
        %1195 = vst.msk [vmem:[#allocation2 + $0xa8] sm:$0xff] %vm1173, %v1120
        %1196 = vst.msk [vmem:[#allocation2 + $0xb0] sm:$0xff] %vm1173, %v1122
        %1197 = vst.msk [vmem:[#allocation2 + $0xb8] sm:$0xff] %vm1173, %v1124
        %1198 = vst.msk [vmem:[#allocation2 + $0xc0] sm:$0xff] %vm1173, %v1126
        %1199 = vst.msk [vmem:[#allocation2 + $0xc8] sm:$0xff] %vm1173, %v1128
        %1200 = vst.msk [vmem:[#allocation2 + $0xd0] sm:$0xff] %vm1173, %v1130
        %1201 = vst.msk [vmem:[#allocation2 + $0xd8] sm:$0xff] %vm1173, %v1132
        %1202 = vst.msk [vmem:[#allocation2 + $0xe0] sm:$0xff] %vm1173, %v1134
        %1203 = vst.msk [vmem:[#allocation2 + $0xe8] sm:$0xff] %vm1173, %v1136
        %1204 = vst.msk [vmem:[#allocation2 + $0xf0] sm:$0xff] %vm1173, %v1138
        %1205 = vst.msk [vmem:[#allocation2 + $0xf8] sm:$0xff] %vm1173, %v1140
        %s1206 = scalar_lea.vmem %s168, 48
        %v1207 = vld [vmem:[%s1206] sm:$0xff]
        %v1208 = vld [vmem:[%s1206 + $0x8] sm:$0xff]
        %v1209 = vld [vmem:[%s1206 + $0x18] sm:$0xff]
        %v1210 = vld [vmem:[%s1206 + $0x20] sm:$0xff]
        %v1211 = vld [vmem:[%s1206 + $0x30] sm:$0xff]
        %v1212 = vld [vmem:[%s1206 + $0x38] sm:$0xff]
        %v1213 = vld [vmem:[%s1206 + $0x48] sm:$0xff]
        %v1214 = vld [vmem:[%s1206 + $0x50] sm:$0xff]
        %v1215 = vld [vmem:[%s1206 + $0x60] sm:$0xff]
        %v1216 = vld [vmem:[%s1206 + $0x68] sm:$0xff]
        %v1217 = vld [vmem:[%s1206 + $0x78] sm:$0xff]
        %v1218 = vld [vmem:[%s1206 + $0x80] sm:$0xff]
        %v1219 = vld [vmem:[%s1206 + $0x90] sm:$0xff]
        %v1220 = vld [vmem:[%s1206 + $0x98] sm:$0xff]
        %v1221 = vld [vmem:[%s1206 + $0xa8] sm:$0xff]
        %v1222 = vld [vmem:[%s1206 + $0xb0] sm:$0xff]
        %v1223 = vld [vmem:[%s1206 + $0xc0] sm:$0xff]
        %v1224 = vld [vmem:[%s1206 + $0xc8] sm:$0xff]
        %v1225 = vld [vmem:[%s1206 + $0xd8] sm:$0xff]
        %v1226 = vld [vmem:[%s1206 + $0xe0] sm:$0xff]
        %v1227 = vld [vmem:[%s1206 + $0xf0] sm:$0xff]
        %v1228 = vld [vmem:[%s1206 + $0xf8] sm:$0xff]
        %v1229 = vld [vmem:[%s1206 + $0x108] sm:$0xff]
        %v1230 = vld [vmem:[%s1206 + $0x110] sm:$0xff]
        %v1231 = vld [vmem:[%s1206 + $0x120] sm:$0xff]
        %v1232 = vld [vmem:[%s1206 + $0x128] sm:$0xff]
        %v1233 = vld [vmem:[%s1206 + $0x138] sm:$0xff]
        %v1234 = vld [vmem:[%s1206 + $0x140] sm:$0xff]
        %v1235 = vld [vmem:[%s1206 + $0x150] sm:$0xff]
        %v1236 = vld [vmem:[%s1206 + $0x158] sm:$0xff]
        %v1237 = vld [vmem:[%s1206 + $0x168] sm:$0xff]
        %v1238 = vld [vmem:[%s1206 + $0x170] sm:$0xff]
        %1271 = vrot.lane.b32.xlu0 %v1207, 24
        %v1272 = vpop.permute.xlu0 %1271
        %1273 = vrot.lane.b32.xlu0 %v1208, 24
        %v1274 = vpop.permute.xlu0 %1273
        %1275 = vrot.lane.b32.xlu0 %v1209, 24
        %v1276 = vpop.permute.xlu0 %1275
        %1277 = vrot.lane.b32.xlu0 %v1210, 24
        %v1278 = vpop.permute.xlu0 %1277
        %1279 = vrot.lane.b32.xlu0 %v1211, 24
        %v1280 = vpop.permute.xlu0 %1279
        %1281 = vrot.lane.b32.xlu0 %v1212, 24
        %v1282 = vpop.permute.xlu0 %1281
        %1283 = vrot.lane.b32.xlu0 %v1213, 24
        %v1284 = vpop.permute.xlu0 %1283
        %1285 = vrot.lane.b32.xlu0 %v1214, 24
        %v1286 = vpop.permute.xlu0 %1285
        %1287 = vrot.lane.b32.xlu0 %v1215, 24
        %v1288 = vpop.permute.xlu0 %1287
        %1289 = vrot.lane.b32.xlu0 %v1216, 24
        %v1290 = vpop.permute.xlu0 %1289
        %1291 = vrot.lane.b32.xlu0 %v1217, 24
        %v1292 = vpop.permute.xlu0 %1291
        %1293 = vrot.lane.b32.xlu0 %v1218, 24
        %v1294 = vpop.permute.xlu0 %1293
        %1295 = vrot.lane.b32.xlu0 %v1219, 24
        %v1296 = vpop.permute.xlu0 %1295
        %1297 = vrot.lane.b32.xlu0 %v1220, 24
        %v1298 = vpop.permute.xlu0 %1297
        %1299 = vrot.lane.b32.xlu0 %v1221, 24
        %v1300 = vpop.permute.xlu0 %1299
        %1301 = vrot.lane.b32.xlu0 %v1222, 24
        %v1302 = vpop.permute.xlu0 %1301
        %1303 = vrot.lane.b32.xlu0 %v1223, 24
        %v1304 = vpop.permute.xlu0 %1303
        %1305 = vrot.lane.b32.xlu0 %v1224, 24
        %v1306 = vpop.permute.xlu0 %1305
        %1307 = vrot.lane.b32.xlu0 %v1225, 24
        %v1308 = vpop.permute.xlu0 %1307
        %1309 = vrot.lane.b32.xlu0 %v1226, 24
        %v1310 = vpop.permute.xlu0 %1309
        %1311 = vrot.lane.b32.xlu0 %v1227, 24
        %v1312 = vpop.permute.xlu0 %1311
        %1313 = vrot.lane.b32.xlu0 %v1228, 24
        %v1314 = vpop.permute.xlu0 %1313
        %1315 = vrot.lane.b32.xlu0 %v1229, 24
        %v1316 = vpop.permute.xlu0 %1315
        %1317 = vrot.lane.b32.xlu0 %v1230, 24
        %v1318 = vpop.permute.xlu0 %1317
        %1319 = vrot.lane.b32.xlu0 %v1231, 24
        %v1320 = vpop.permute.xlu0 %1319
        %1321 = vrot.lane.b32.xlu0 %v1232, 24
        %v1322 = vpop.permute.xlu0 %1321
        %1323 = vrot.lane.b32.xlu0 %v1233, 24
        %v1324 = vpop.permute.xlu0 %1323
        %1325 = vrot.lane.b32.xlu0 %v1234, 24
        %v1326 = vpop.permute.xlu0 %1325
        %1327 = vrot.lane.b32.xlu0 %v1235, 24
        %v1328 = vpop.permute.xlu0 %1327
        %1329 = vrot.lane.b32.xlu0 %v1236, 24
        %v1330 = vpop.permute.xlu0 %1329
        %1331 = vrot.lane.b32.xlu0 %v1237, 24
        %v1332 = vpop.permute.xlu0 %1331
        %1333 = vrot.lane.b32.xlu0 %v1238, 24
        %v1334 = vpop.permute.xlu0 %1333
        %vm1367 = vcmask 228544
        %1368 = vst.msk [vmem:[#allocation2] sm:$0xff] %vm1367, %v1272
        %1369 = vst.msk [vmem:[#allocation2 + $0x8] sm:$0xff] %vm1367, %v1274
        %1370 = vst.msk [vmem:[#allocation2 + $0x10] sm:$0xff] %vm1367, %v1276
        %1371 = vst.msk [vmem:[#allocation2 + $0x18] sm:$0xff] %vm1367, %v1278
        %1372 = vst.msk [vmem:[#allocation2 + $0x20] sm:$0xff] %vm1367, %v1280
        %1373 = vst.msk [vmem:[#allocation2 + $0x28] sm:$0xff] %vm1367, %v1282
        %1374 = vst.msk [vmem:[#allocation2 + $0x30] sm:$0xff] %vm1367, %v1284
        %1375 = vst.msk [vmem:[#allocation2 + $0x38] sm:$0xff] %vm1367, %v1286
        %1376 = vst.msk [vmem:[#allocation2 + $0x40] sm:$0xff] %vm1367, %v1288
        %1377 = vst.msk [vmem:[#allocation2 + $0x48] sm:$0xff] %vm1367, %v1290
        %1378 = vst.msk [vmem:[#allocation2 + $0x50] sm:$0xff] %vm1367, %v1292
        %1379 = vst.msk [vmem:[#allocation2 + $0x58] sm:$0xff] %vm1367, %v1294
        %1380 = vst.msk [vmem:[#allocation2 + $0x60] sm:$0xff] %vm1367, %v1296
        %1381 = vst.msk [vmem:[#allocation2 + $0x68] sm:$0xff] %vm1367, %v1298
        %1382 = vst.msk [vmem:[#allocation2 + $0x70] sm:$0xff] %vm1367, %v1300
        %1383 = vst.msk [vmem:[#allocation2 + $0x78] sm:$0xff] %vm1367, %v1302
        %1384 = vst.msk [vmem:[#allocation2 + $0x80] sm:$0xff] %vm1367, %v1304
        %1385 = vst.msk [vmem:[#allocation2 + $0x88] sm:$0xff] %vm1367, %v1306
        %1386 = vst.msk [vmem:[#allocation2 + $0x90] sm:$0xff] %vm1367, %v1308
        %1387 = vst.msk [vmem:[#allocation2 + $0x98] sm:$0xff] %vm1367, %v1310
        %1388 = vst.msk [vmem:[#allocation2 + $0xa0] sm:$0xff] %vm1367, %v1312
        %1389 = vst.msk [vmem:[#allocation2 + $0xa8] sm:$0xff] %vm1367, %v1314
        %1390 = vst.msk [vmem:[#allocation2 + $0xb0] sm:$0xff] %vm1367, %v1316
        %1391 = vst.msk [vmem:[#allocation2 + $0xb8] sm:$0xff] %vm1367, %v1318
        %1392 = vst.msk [vmem:[#allocation2 + $0xc0] sm:$0xff] %vm1367, %v1320
        %1393 = vst.msk [vmem:[#allocation2 + $0xc8] sm:$0xff] %vm1367, %v1322
        %1394 = vst.msk [vmem:[#allocation2 + $0xd0] sm:$0xff] %vm1367, %v1324
        %1395 = vst.msk [vmem:[#allocation2 + $0xd8] sm:$0xff] %vm1367, %v1326
        %1396 = vst.msk [vmem:[#allocation2 + $0xe0] sm:$0xff] %vm1367, %v1328
        %1397 = vst.msk [vmem:[#allocation2 + $0xe8] sm:$0xff] %vm1367, %v1330
        %1398 = vst.msk [vmem:[#allocation2 + $0xf0] sm:$0xff] %vm1367, %v1332
        %1399 = vst.msk [vmem:[#allocation2 + $0xf8] sm:$0xff] %vm1367, %v1334
        %v1400 = vld [vmem:[%s1206 + $0x1] sm:$0xff]
        %v1401 = vld [vmem:[%s1206 + $0x9] sm:$0xff]
        %v1402 = vld [vmem:[%s1206 + $0x19] sm:$0xff]
        %v1403 = vld [vmem:[%s1206 + $0x21] sm:$0xff]
        %v1404 = vld [vmem:[%s1206 + $0x31] sm:$0xff]
        %v1405 = vld [vmem:[%s1206 + $0x39] sm:$0xff]
        %v1406 = vld [vmem:[%s1206 + $0x49] sm:$0xff]
        %v1407 = vld [vmem:[%s1206 + $0x51] sm:$0xff]
        %v1408 = vld [vmem:[%s1206 + $0x61] sm:$0xff]
        %v1409 = vld [vmem:[%s1206 + $0x69] sm:$0xff]
        %v1410 = vld [vmem:[%s1206 + $0x79] sm:$0xff]
        %v1411 = vld [vmem:[%s1206 + $0x81] sm:$0xff]
        %v1412 = vld [vmem:[%s1206 + $0x91] sm:$0xff]
        %v1413 = vld [vmem:[%s1206 + $0x99] sm:$0xff]
        %v1414 = vld [vmem:[%s1206 + $0xa9] sm:$0xff]
        %v1415 = vld [vmem:[%s1206 + $0xb1] sm:$0xff]
        %v1416 = vld [vmem:[%s1206 + $0xc1] sm:$0xff]
        %v1417 = vld [vmem:[%s1206 + $0xc9] sm:$0xff]
        %v1418 = vld [vmem:[%s1206 + $0xd9] sm:$0xff]
        %v1419 = vld [vmem:[%s1206 + $0xe1] sm:$0xff]
        %v1420 = vld [vmem:[%s1206 + $0xf1] sm:$0xff]
        %v1421 = vld [vmem:[%s1206 + $0xf9] sm:$0xff]
        %v1422 = vld [vmem:[%s1206 + $0x109] sm:$0xff]
        %v1423 = vld [vmem:[%s1206 + $0x111] sm:$0xff]
        %v1424 = vld [vmem:[%s1206 + $0x121] sm:$0xff]
        %v1425 = vld [vmem:[%s1206 + $0x129] sm:$0xff]
        %v1426 = vld [vmem:[%s1206 + $0x139] sm:$0xff]
        %v1427 = vld [vmem:[%s1206 + $0x141] sm:$0xff]
        %v1428 = vld [vmem:[%s1206 + $0x151] sm:$0xff]
        %v1429 = vld [vmem:[%s1206 + $0x159] sm:$0xff]
        %v1430 = vld [vmem:[%s1206 + $0x169] sm:$0xff]
        %v1431 = vld [vmem:[%s1206 + $0x171] sm:$0xff]
        %1464 = vrot.lane.b32.xlu0 %v1400, 28
        %v1465 = vpop.permute.xlu0 %1464
        %1466 = vrot.lane.b32.xlu0 %v1401, 28
        %v1467 = vpop.permute.xlu0 %1466
        %1468 = vrot.lane.b32.xlu0 %v1402, 28
        %v1469 = vpop.permute.xlu0 %1468
        %1470 = vrot.lane.b32.xlu0 %v1403, 28
        %v1471 = vpop.permute.xlu0 %1470
        %1472 = vrot.lane.b32.xlu0 %v1404, 28
        %v1473 = vpop.permute.xlu0 %1472
        %1474 = vrot.lane.b32.xlu0 %v1405, 28
        %v1475 = vpop.permute.xlu0 %1474
        %1476 = vrot.lane.b32.xlu0 %v1406, 28
        %v1477 = vpop.permute.xlu0 %1476
        %1478 = vrot.lane.b32.xlu0 %v1407, 28
        %v1479 = vpop.permute.xlu0 %1478
        %1480 = vrot.lane.b32.xlu0 %v1408, 28
        %v1481 = vpop.permute.xlu0 %1480
        %1482 = vrot.lane.b32.xlu0 %v1409, 28
        %v1483 = vpop.permute.xlu0 %1482
        %1484 = vrot.lane.b32.xlu0 %v1410, 28
        %v1485 = vpop.permute.xlu0 %1484
        %1486 = vrot.lane.b32.xlu0 %v1411, 28
        %v1487 = vpop.permute.xlu0 %1486
        %1488 = vrot.lane.b32.xlu0 %v1412, 28
        %v1489 = vpop.permute.xlu0 %1488
        %1490 = vrot.lane.b32.xlu0 %v1413, 28
        %v1491 = vpop.permute.xlu0 %1490
        %1492 = vrot.lane.b32.xlu0 %v1414, 28
        %v1493 = vpop.permute.xlu0 %1492
        %1494 = vrot.lane.b32.xlu0 %v1415, 28
        %v1495 = vpop.permute.xlu0 %1494
        %1496 = vrot.lane.b32.xlu0 %v1416, 28
        %v1497 = vpop.permute.xlu0 %1496
        %1498 = vrot.lane.b32.xlu0 %v1417, 28
        %v1499 = vpop.permute.xlu0 %1498
        %1500 = vrot.lane.b32.xlu0 %v1418, 28
        %v1501 = vpop.permute.xlu0 %1500
        %1502 = vrot.lane.b32.xlu0 %v1419, 28
        %v1503 = vpop.permute.xlu0 %1502
        %1504 = vrot.lane.b32.xlu0 %v1420, 28
        %v1505 = vpop.permute.xlu0 %1504
        %1506 = vrot.lane.b32.xlu0 %v1421, 28
        %v1507 = vpop.permute.xlu0 %1506
        %1508 = vrot.lane.b32.xlu0 %v1422, 28
        %v1509 = vpop.permute.xlu0 %1508
        %1510 = vrot.lane.b32.xlu0 %v1423, 28
        %v1511 = vpop.permute.xlu0 %1510
        %1512 = vrot.lane.b32.xlu0 %v1424, 28
        %v1513 = vpop.permute.xlu0 %1512
        %1514 = vrot.lane.b32.xlu0 %v1425, 28
        %v1515 = vpop.permute.xlu0 %1514
        %1516 = vrot.lane.b32.xlu0 %v1426, 28
        %v1517 = vpop.permute.xlu0 %1516
        %1518 = vrot.lane.b32.xlu0 %v1427, 28
        %v1519 = vpop.permute.xlu0 %1518
        %1520 = vrot.lane.b32.xlu0 %v1428, 28
        %v1521 = vpop.permute.xlu0 %1520
        %1522 = vrot.lane.b32.xlu0 %v1429, 28
        %v1523 = vpop.permute.xlu0 %1522
        %1524 = vrot.lane.b32.xlu0 %v1430, 28
        %v1525 = vpop.permute.xlu0 %1524
        %1526 = vrot.lane.b32.xlu0 %v1431, 28
        %v1527 = vpop.permute.xlu0 %1526
        %vm1560 = vcmask 261344
        %1561 = vst.msk [vmem:[#allocation2] sm:$0xff] %vm1560, %v1465
        %1562 = vst.msk [vmem:[#allocation2 + $0x8] sm:$0xff] %vm1560, %v1467
        %1563 = vst.msk [vmem:[#allocation2 + $0x10] sm:$0xff] %vm1560, %v1469
        %1564 = vst.msk [vmem:[#allocation2 + $0x18] sm:$0xff] %vm1560, %v1471
        %1565 = vst.msk [vmem:[#allocation2 + $0x20] sm:$0xff] %vm1560, %v1473
        %1566 = vst.msk [vmem:[#allocation2 + $0x28] sm:$0xff] %vm1560, %v1475
        %1567 = vst.msk [vmem:[#allocation2 + $0x30] sm:$0xff] %vm1560, %v1477
        %1568 = vst.msk [vmem:[#allocation2 + $0x38] sm:$0xff] %vm1560, %v1479
        %1569 = vst.msk [vmem:[#allocation2 + $0x40] sm:$0xff] %vm1560, %v1481
        %1570 = vst.msk [vmem:[#allocation2 + $0x48] sm:$0xff] %vm1560, %v1483
        %1571 = vst.msk [vmem:[#allocation2 + $0x50] sm:$0xff] %vm1560, %v1485
        %1572 = vst.msk [vmem:[#allocation2 + $0x58] sm:$0xff] %vm1560, %v1487
        %1573 = vst.msk [vmem:[#allocation2 + $0x60] sm:$0xff] %vm1560, %v1489
        %1574 = vst.msk [vmem:[#allocation2 + $0x68] sm:$0xff] %vm1560, %v1491
        %1575 = vst.msk [vmem:[#allocation2 + $0x70] sm:$0xff] %vm1560, %v1493
        %1576 = vst.msk [vmem:[#allocation2 + $0x78] sm:$0xff] %vm1560, %v1495
        %1577 = vst.msk [vmem:[#allocation2 + $0x80] sm:$0xff] %vm1560, %v1497
        %1578 = vst.msk [vmem:[#allocation2 + $0x88] sm:$0xff] %vm1560, %v1499
        %1579 = vst.msk [vmem:[#allocation2 + $0x90] sm:$0xff] %vm1560, %v1501
        %1580 = vst.msk [vmem:[#allocation2 + $0x98] sm:$0xff] %vm1560, %v1503
        %1581 = vst.msk [vmem:[#allocation2 + $0xa0] sm:$0xff] %vm1560, %v1505
        %1582 = vst.msk [vmem:[#allocation2 + $0xa8] sm:$0xff] %vm1560, %v1507
        %1583 = vst.msk [vmem:[#allocation2 + $0xb0] sm:$0xff] %vm1560, %v1509
        %1584 = vst.msk [vmem:[#allocation2 + $0xb8] sm:$0xff] %vm1560, %v1511
        %1585 = vst.msk [vmem:[#allocation2 + $0xc0] sm:$0xff] %vm1560, %v1513
        %1586 = vst.msk [vmem:[#allocation2 + $0xc8] sm:$0xff] %vm1560, %v1515
        %1587 = vst.msk [vmem:[#allocation2 + $0xd0] sm:$0xff] %vm1560, %v1517
        %1588 = vst.msk [vmem:[#allocation2 + $0xd8] sm:$0xff] %vm1560, %v1519
        %1589 = vst.msk [vmem:[#allocation2 + $0xe0] sm:$0xff] %vm1560, %v1521
        %1590 = vst.msk [vmem:[#allocation2 + $0xe8] sm:$0xff] %vm1560, %v1523
        %1591 = vst.msk [vmem:[#allocation2 + $0xf0] sm:$0xff] %vm1560, %v1525
        %1592 = vst.msk [vmem:[#allocation2 + $0xf8] sm:$0xff] %vm1560, %v1527
        %v1593 = vld [vmem:[%s1206 + $0x2] sm:$0xff]
        %v1594 = vld [vmem:[%s1206 + $0xa] sm:$0xff]
        %v1595 = vld [vmem:[%s1206 + $0x1a] sm:$0xff]
        %v1596 = vld [vmem:[%s1206 + $0x22] sm:$0xff]
        %v1597 = vld [vmem:[%s1206 + $0x32] sm:$0xff]
        %v1598 = vld [vmem:[%s1206 + $0x3a] sm:$0xff]
        %v1599 = vld [vmem:[%s1206 + $0x4a] sm:$0xff]
        %v1600 = vld [vmem:[%s1206 + $0x52] sm:$0xff]
        %v1601 = vld [vmem:[%s1206 + $0x62] sm:$0xff]
        %v1602 = vld [vmem:[%s1206 + $0x6a] sm:$0xff]
        %v1603 = vld [vmem:[%s1206 + $0x7a] sm:$0xff]
        %v1604 = vld [vmem:[%s1206 + $0x82] sm:$0xff]
        %v1605 = vld [vmem:[%s1206 + $0x92] sm:$0xff]
        %v1606 = vld [vmem:[%s1206 + $0x9a] sm:$0xff]
        %v1607 = vld [vmem:[%s1206 + $0xaa] sm:$0xff]
        %v1608 = vld [vmem:[%s1206 + $0xb2] sm:$0xff]
        %v1609 = vld [vmem:[%s1206 + $0xc2] sm:$0xff]
        %v1610 = vld [vmem:[%s1206 + $0xca] sm:$0xff]
        %v1611 = vld [vmem:[%s1206 + $0xda] sm:$0xff]
        %v1612 = vld [vmem:[%s1206 + $0xe2] sm:$0xff]
        %v1613 = vld [vmem:[%s1206 + $0xf2] sm:$0xff]
        %v1614 = vld [vmem:[%s1206 + $0xfa] sm:$0xff]
        %v1615 = vld [vmem:[%s1206 + $0x10a] sm:$0xff]
        %v1616 = vld [vmem:[%s1206 + $0x112] sm:$0xff]
        %v1617 = vld [vmem:[%s1206 + $0x122] sm:$0xff]
        %v1618 = vld [vmem:[%s1206 + $0x12a] sm:$0xff]
        %v1619 = vld [vmem:[%s1206 + $0x13a] sm:$0xff]
        %v1620 = vld [vmem:[%s1206 + $0x142] sm:$0xff]
        %v1621 = vld [vmem:[%s1206 + $0x152] sm:$0xff]
        %v1622 = vld [vmem:[%s1206 + $0x15a] sm:$0xff]
        %v1623 = vld [vmem:[%s1206 + $0x16a] sm:$0xff]
        %v1624 = vld [vmem:[%s1206 + $0x172] sm:$0xff]
        %1657 = vrot.lane.b32.xlu0 %v1593, 32
        %v1658 = vpop.permute.xlu0 %1657
        %1659 = vrot.lane.b32.xlu0 %v1594, 32
        %v1660 = vpop.permute.xlu0 %1659
        %1661 = vrot.lane.b32.xlu0 %v1595, 32
        %v1662 = vpop.permute.xlu0 %1661
        %1663 = vrot.lane.b32.xlu0 %v1596, 32
        %v1664 = vpop.permute.xlu0 %1663
        %1665 = vrot.lane.b32.xlu0 %v1597, 32
        %v1666 = vpop.permute.xlu0 %1665
        %1667 = vrot.lane.b32.xlu0 %v1598, 32
        %v1668 = vpop.permute.xlu0 %1667
        %1669 = vrot.lane.b32.xlu0 %v1599, 32
        %v1670 = vpop.permute.xlu0 %1669
        %1671 = vrot.lane.b32.xlu0 %v1600, 32
        %v1672 = vpop.permute.xlu0 %1671
        %1673 = vrot.lane.b32.xlu0 %v1601, 32
        %v1674 = vpop.permute.xlu0 %1673
        %1675 = vrot.lane.b32.xlu0 %v1602, 32
        %v1676 = vpop.permute.xlu0 %1675
        %1677 = vrot.lane.b32.xlu0 %v1603, 32
        %v1678 = vpop.permute.xlu0 %1677
        %1679 = vrot.lane.b32.xlu0 %v1604, 32
        %v1680 = vpop.permute.xlu0 %1679
        %1681 = vrot.lane.b32.xlu0 %v1605, 32
        %v1682 = vpop.permute.xlu0 %1681
        %1683 = vrot.lane.b32.xlu0 %v1606, 32
        %v1684 = vpop.permute.xlu0 %1683
        %1685 = vrot.lane.b32.xlu0 %v1607, 32
        %v1686 = vpop.permute.xlu0 %1685
        %1687 = vrot.lane.b32.xlu0 %v1608, 32
        %v1688 = vpop.permute.xlu0 %1687
        %1689 = vrot.lane.b32.xlu0 %v1609, 32
        %v1690 = vpop.permute.xlu0 %1689
        %1691 = vrot.lane.b32.xlu0 %v1610, 32
        %v1692 = vpop.permute.xlu0 %1691
        %1693 = vrot.lane.b32.xlu0 %v1611, 32
        %v1694 = vpop.permute.xlu0 %1693
        %1695 = vrot.lane.b32.xlu0 %v1612, 32
        %v1696 = vpop.permute.xlu0 %1695
        %1697 = vrot.lane.b32.xlu0 %v1613, 32
        %v1698 = vpop.permute.xlu0 %1697
        %1699 = vrot.lane.b32.xlu0 %v1614, 32
        %v1700 = vpop.permute.xlu0 %1699
        %1701 = vrot.lane.b32.xlu0 %v1615, 32
        %v1702 = vpop.permute.xlu0 %1701
        %1703 = vrot.lane.b32.xlu0 %v1616, 32
        %v1704 = vpop.permute.xlu0 %1703
        %1705 = vrot.lane.b32.xlu0 %v1617, 32
        %v1706 = vpop.permute.xlu0 %1705
        %1707 = vrot.lane.b32.xlu0 %v1618, 32
        %v1708 = vpop.permute.xlu0 %1707
        %1709 = vrot.lane.b32.xlu0 %v1619, 32
        %v1710 = vpop.permute.xlu0 %1709
        %1711 = vrot.lane.b32.xlu0 %v1620, 32
        %v1712 = vpop.permute.xlu0 %1711
        %1713 = vrot.lane.b32.xlu0 %v1621, 32
        %v1714 = vpop.permute.xlu0 %1713
        %1715 = vrot.lane.b32.xlu0 %v1622, 32
        %v1716 = vpop.permute.xlu0 %1715
        %1717 = vrot.lane.b32.xlu0 %v1623, 32
        %v1718 = vpop.permute.xlu0 %1717
        %1719 = vrot.lane.b32.xlu0 %v1624, 32
        %v1720 = vpop.permute.xlu0 %1719
        %vm1753 = vcmask 294144
        %1754 = vst.msk [vmem:[#allocation2] sm:$0xff] %vm1753, %v1658
        %1755 = vst.msk [vmem:[#allocation2 + $0x8] sm:$0xff] %vm1753, %v1660
        %1756 = vst.msk [vmem:[#allocation2 + $0x10] sm:$0xff] %vm1753, %v1662
        %1757 = vst.msk [vmem:[#allocation2 + $0x18] sm:$0xff] %vm1753, %v1664
        %1758 = vst.msk [vmem:[#allocation2 + $0x20] sm:$0xff] %vm1753, %v1666
        %1759 = vst.msk [vmem:[#allocation2 + $0x28] sm:$0xff] %vm1753, %v1668
        %1760 = vst.msk [vmem:[#allocation2 + $0x30] sm:$0xff] %vm1753, %v1670
        %1761 = vst.msk [vmem:[#allocation2 + $0x38] sm:$0xff] %vm1753, %v1672
        %1762 = vst.msk [vmem:[#allocation2 + $0x40] sm:$0xff] %vm1753, %v1674
        %1763 = vst.msk [vmem:[#allocation2 + $0x48] sm:$0xff] %vm1753, %v1676
        %1764 = vst.msk [vmem:[#allocation2 + $0x50] sm:$0xff] %vm1753, %v1678
        %1765 = vst.msk [vmem:[#allocation2 + $0x58] sm:$0xff] %vm1753, %v1680
        %1766 = vst.msk [vmem:[#allocation2 + $0x60] sm:$0xff] %vm1753, %v1682
        %1767 = vst.msk [vmem:[#allocation2 + $0x68] sm:$0xff] %vm1753, %v1684
        %1768 = vst.msk [vmem:[#allocation2 + $0x70] sm:$0xff] %vm1753, %v1686
        %1769 = vst.msk [vmem:[#allocation2 + $0x78] sm:$0xff] %vm1753, %v1688
        %1770 = vst.msk [vmem:[#allocation2 + $0x80] sm:$0xff] %vm1753, %v1690
        %1771 = vst.msk [vmem:[#allocation2 + $0x88] sm:$0xff] %vm1753, %v1692
        %1772 = vst.msk [vmem:[#allocation2 + $0x90] sm:$0xff] %vm1753, %v1694
        %1773 = vst.msk [vmem:[#allocation2 + $0x98] sm:$0xff] %vm1753, %v1696
        %1774 = vst.msk [vmem:[#allocation2 + $0xa0] sm:$0xff] %vm1753, %v1698
        %1775 = vst.msk [vmem:[#allocation2 + $0xa8] sm:$0xff] %vm1753, %v1700
        %1776 = vst.msk [vmem:[#allocation2 + $0xb0] sm:$0xff] %vm1753, %v1702
        %1777 = vst.msk [vmem:[#allocation2 + $0xb8] sm:$0xff] %vm1753, %v1704
        %1778 = vst.msk [vmem:[#allocation2 + $0xc0] sm:$0xff] %vm1753, %v1706
        %1779 = vst.msk [vmem:[#allocation2 + $0xc8] sm:$0xff] %vm1753, %v1708
        %1780 = vst.msk [vmem:[#allocation2 + $0xd0] sm:$0xff] %vm1753, %v1710
        %1781 = vst.msk [vmem:[#allocation2 + $0xd8] sm:$0xff] %vm1753, %v1712
        %1782 = vst.msk [vmem:[#allocation2 + $0xe0] sm:$0xff] %vm1753, %v1714
        %1783 = vst.msk [vmem:[#allocation2 + $0xe8] sm:$0xff] %vm1753, %v1716
        %1784 = vst.msk [vmem:[#allocation2 + $0xf0] sm:$0xff] %vm1753, %v1718
        %1785 = vst.msk [vmem:[#allocation2 + $0xf8] sm:$0xff] %vm1753, %v1720
        %v1786 = vld [vmem:[#allocation2] sm:$0xff]
        %v1787 = vld [vmem:[#allocation2 + $0x8] sm:$0xff]
        %v1788 = vld [vmem:[#allocation2 + $0x10] sm:$0xff]
        %v1789 = vld [vmem:[#allocation2 + $0x18] sm:$0xff]
        %v1790 = vld [vmem:[#allocation2 + $0x20] sm:$0xff]
        %v1791 = vld [vmem:[#allocation2 + $0x28] sm:$0xff]
        %v1792 = vld [vmem:[#allocation2 + $0x30] sm:$0xff]
        %v1793 = vld [vmem:[#allocation2 + $0x38] sm:$0xff]
        %v1794 = vld [vmem:[#allocation2 + $0x40] sm:$0xff]
        %v1795 = vld [vmem:[#allocation2 + $0x48] sm:$0xff]
        %v1796 = vld [vmem:[#allocation2 + $0x50] sm:$0xff]
        %v1797 = vld [vmem:[#allocation2 + $0x58] sm:$0xff]
        %v1798 = vld [vmem:[#allocation2 + $0x60] sm:$0xff]
        %v1799 = vld [vmem:[#allocation2 + $0x68] sm:$0xff]
        %v1800 = vld [vmem:[#allocation2 + $0x70] sm:$0xff]
        %v1801 = vld [vmem:[#allocation2 + $0x78] sm:$0xff]
        %v1802 = vld [vmem:[#allocation2 + $0x80] sm:$0xff]
        %v1803 = vld [vmem:[#allocation2 + $0x88] sm:$0xff]
        %v1804 = vld [vmem:[#allocation2 + $0x90] sm:$0xff]
        %v1805 = vld [vmem:[#allocation2 + $0x98] sm:$0xff]
        %v1806 = vld [vmem:[#allocation2 + $0xa0] sm:$0xff]
        %v1807 = vld [vmem:[#allocation2 + $0xa8] sm:$0xff]
        %v1808 = vld [vmem:[#allocation2 + $0xb0] sm:$0xff]
        %v1809 = vld [vmem:[#allocation2 + $0xb8] sm:$0xff]
        %v1810 = vld [vmem:[#allocation2 + $0xc0] sm:$0xff]
        %v1811 = vld [vmem:[#allocation2 + $0xc8] sm:$0xff]
        %v1812 = vld [vmem:[#allocation2 + $0xd0] sm:$0xff]
        %v1813 = vld [vmem:[#allocation2 + $0xd8] sm:$0xff]
        %v1814 = vld [vmem:[#allocation2 + $0xe0] sm:$0xff]
        %v1815 = vld [vmem:[#allocation2 + $0xe8] sm:$0xff]
        %v1816 = vld [vmem:[#allocation2 + $0xf0] sm:$0xff]
        %v1817 = vld [vmem:[#allocation2 + $0xf8] sm:$0xff]
        %v1819 = vlaneseq
        %v1820 = vshrl.u32 %v1819, 7
        %v1821 = vsub.s32 0, %v1820
        %v1822 = vrot.slane %v174, %v1821
        %vm1824 = vcmask 293888
        %v1826 = vsel %vm1824, %v1786, 0
        %v1829 = vsel %vm1824, %v1787, 0
        %v1832 = vsel %vm1824, %v1788, 0
        %v1835 = vsel %vm1824, %v1789, 0
        %v1838 = vsel %vm1824, %v1790, 0
        %v1841 = vsel %vm1824, %v1791, 0
        %v1844 = vsel %vm1824, %v1792, 0
        %v1847 = vsel %vm1824, %v1793, 0
        %v1850 = vsel %vm1824, %v1794, 0
        %v1853 = vsel %vm1824, %v1795, 0
        %v1856 = vsel %vm1824, %v1796, 0
        %v1859 = vsel %vm1824, %v1797, 0
        %v1862 = vsel %vm1824, %v1798, 0
        %v1865 = vsel %vm1824, %v1799, 0
        %v1868 = vsel %vm1824, %v1800, 0
        %v1871 = vsel %vm1824, %v1801, 0
        %v1874 = vsel %vm1824, %v1802, 0
        %v1877 = vsel %vm1824, %v1803, 0
        %v1880 = vsel %vm1824, %v1804, 0
        %v1883 = vsel %vm1824, %v1805, 0
        %v1886 = vsel %vm1824, %v1806, 0
        %v1889 = vsel %vm1824, %v1807, 0
        %v1892 = vsel %vm1824, %v1808, 0
        %v1895 = vsel %vm1824, %v1809, 0
        %v1898 = vsel %vm1824, %v1810, 0
        %v1901 = vsel %vm1824, %v1811, 0
        %v1904 = vsel %vm1824, %v1812, 0
        %v1907 = vsel %vm1824, %v1813, 0
        %v1910 = vsel %vm1824, %v1814, 0
        %v1913 = vsel %vm1824, %v1815, 0
        %v1916 = vsel %vm1824, %v1816, 0
        %v1919 = vsel %vm1824, %v1817, 0
        %vm1921 = vcmask 1043456
        %v1923 = vsel %vm1921, %v173, 0
        %1925 = vmatprep.subr.mxu0 0.0
        %1926 = vmatpush1.msra.mxu0 %v169
        %1927 = vmatprep.subr.mxu0 0.0
        %1928 = vmatpush1.msra.mxu0 %v170
        %1929 = vmatprep.subr.mxu0 0.0
        %1930 = vmatpush1.msra.mxu0 %v171
        %1931 = vmatprep.subr.mxu0 0.0
        %1932 = vmatpush1.msra.mxu0 %v172
        %1933 = vmatprep.subr.mxu0 0.0
        %1934 = vmatpush1.msra.mxu0 %v1923
        %1935 = vmatprep.subr.mxu0 0.0
        %1936 = vmatpush1.msra.mxu0 0.0
        %1937 = vmatprep.subr.mxu0 0.0
        %1938 = vmatpush1.msra.mxu0 0.0
        %1939 = vmatprep.subr.mxu0 0.0
        %1940 = vmatpush1.msra.mxu0 0.0
        %1941 = vmatprep.subr.mxu0 0.0
        %1942 = vmatpush1.msra.mxu0 0.0
        %1943 = vmatprep.subr.mxu0 0.0
        %1944 = vmatpush1.msra.mxu0 0.0
        %1945 = vmatprep.subr.mxu0 0.0
        %1946 = vmatpush1.msra.mxu0 0.0
        %1947 = vmatprep.subr.mxu0 0.0
        %1948 = vmatpush1.msra.mxu0 0.0
        %1949 = vmatprep.subr.mxu0 0.0
        %1950 = vmatpush1.msra.mxu0 0.0
        %1951 = vmatprep.subr.mxu0 0.0
        %1952 = vmatpush1.msra.mxu0 0.0
        %1953 = vmatprep.subr.mxu0 0.0
        %1954 = vmatpush1.msra.mxu0 0.0
        %1955 = vmatprep.subr.mxu0 0.0
        %1956 = vmatpush1.msra.mxu0 0.0
        %1957 = vmatprep.subr.mxu0 0.0
        %1958 = vmatpush1.msra.mxu0 0.0
        %1959 = vmatprep.subr.mxu0 0.0
        %1960 = vmatpush1.msra.mxu0 0.0
        %1961 = vmatprep.subr.mxu0 0.0
        %1962 = vmatpush1.msra.mxu0 0.0
        %1963 = vmatprep.subr.mxu0 0.0
        %1964 = vmatpush1.msra.mxu0 0.0
        %1965 = vmatprep.subr.mxu0 0.0
        %1966 = vmatpush1.msra.mxu0 0.0
        %1967 = vmatprep.subr.mxu0 0.0
        %1968 = vmatpush1.msra.mxu0 0.0
        %1969 = vmatprep.subr.mxu0 0.0
        %1970 = vmatpush1.msra.mxu0 0.0
        %1971 = vmatprep.subr.mxu0 0.0
        %1972 = vmatpush1.msra.mxu0 0.0
        %1973 = vmatprep.subr.mxu0 0.0
        %1974 = vmatpush1.msra.mxu0 0.0
        %1975 = vmatprep.subr.mxu0 0.0
        %1976 = vmatpush1.msra.mxu0 0.0
        %1977 = vmatprep.subr.mxu0 0.0
        %1978 = vmatpush1.msra.mxu0 0.0
        %1979 = vmatprep.subr.mxu0 0.0
        %1980 = vmatpush1.msra.mxu0 0.0
        %1981 = vmatprep.subr.mxu0 0.0
        %1982 = vmatpush1.msra.mxu0 0.0
        %1983 = vmatprep.subr.mxu0 0.0
        %1984 = vmatpush1.msra.mxu0 0.0
        %1985 = vmatprep.subr.mxu0 0.0
        %1986 = vmatpush1.msra.mxu0 0.0
        %1987 = vmatprep.subr.mxu0 0.0
        %1988 = vmatpush1.msra.mxu0 0.0
        %1989 = vmatprep.mubr.f32.mxu0 0.0
        %1990 = vmatmul.mubr.f32.gmra.mrb[0].mxu0 %v1826
        %v1991 = vpop.f32.mrb[0].mxu0
        %v1992 = vadd.f32 %v1822, %v1991
        %v1993 = vpop.f32.mrb[0].mxu0
        %1994 = vmatprep.mubr.f32.mxu0 0.0
        %1995 = vmatmul.mubr.f32.gmra.mrb[0].mxu0 %v1829
        %v1996 = vpop.f32.mrb[0].mxu0
        %v1997 = vadd.f32 %v1822, %v1996
        %v1998 = vpop.f32.mrb[0].mxu0
        %1999 = vmatprep.mubr.f32.mxu0 0.0
        %2000 = vmatmul.mubr.f32.gmra.mrb[0].mxu0 %v1832
        %v2001 = vpop.f32.mrb[0].mxu0
        %v2002 = vadd.f32 %v1822, %v2001
        %v2003 = vpop.f32.mrb[0].mxu0
        %2004 = vmatprep.mubr.f32.mxu0 0.0
        %2005 = vmatmul.mubr.f32.gmra.mrb[0].mxu0 %v1835
        %v2006 = vpop.f32.mrb[0].mxu0
        %v2007 = vadd.f32 %v1822, %v2006
        %v2008 = vpop.f32.mrb[0].mxu0
        %2009 = vmatprep.mubr.f32.mxu0 0.0
        %2010 = vmatmul.mubr.f32.gmra.mrb[0].mxu0 %v1838
        %v2011 = vpop.f32.mrb[0].mxu0
        %v2012 = vadd.f32 %v1822, %v2011
        %v2013 = vpop.f32.mrb[0].mxu0
        %2014 = vmatprep.mubr.f32.mxu0 0.0
        %2015 = vmatmul.mubr.f32.gmra.mrb[0].mxu0 %v1841
        %v2016 = vpop.f32.mrb[0].mxu0
        %v2017 = vadd.f32 %v1822, %v2016
        %v2018 = vpop.f32.mrb[0].mxu0
        %2019 = vmatprep.mubr.f32.mxu0 0.0
        %2020 = vmatmul.mubr.f32.gmra.mrb[0].mxu0 %v1844
        %v2021 = vpop.f32.mrb[0].mxu0
        %v2022 = vadd.f32 %v1822, %v2021
        %v2023 = vpop.f32.mrb[0].mxu0
        %2024 = vmatprep.mubr.f32.mxu0 0.0
        %2025 = vmatmul.mubr.f32.gmra.mrb[0].mxu0 %v1847
        %v2026 = vpop.f32.mrb[0].mxu0
        %v2027 = vadd.f32 %v1822, %v2026
        %v2028 = vpop.f32.mrb[0].mxu0
        %2029 = vmatprep.mubr.f32.mxu0 0.0
        %2030 = vmatmul.mubr.f32.gmra.mrb[0].mxu0 %v1850
        %v2031 = vpop.f32.mrb[0].mxu0
        %v2032 = vadd.f32 %v1822, %v2031
        %v2033 = vpop.f32.mrb[0].mxu0
        %2034 = vmatprep.mubr.f32.mxu0 0.0
        %2035 = vmatmul.mubr.f32.gmra.mrb[0].mxu0 %v1853
        %v2036 = vpop.f32.mrb[0].mxu0
        %v2037 = vadd.f32 %v1822, %v2036
        %v2038 = vpop.f32.mrb[0].mxu0
        %2039 = vmatprep.mubr.f32.mxu0 0.0
        %2040 = vmatmul.mubr.f32.gmra.mrb[0].mxu0 %v1856
        %v2041 = vpop.f32.mrb[0].mxu0
        %v2042 = vadd.f32 %v1822, %v2041
        %v2043 = vpop.f32.mrb[0].mxu0
        %2044 = vmatprep.mubr.f32.mxu0 0.0
        %2045 = vmatmul.mubr.f32.gmra.mrb[0].mxu0 %v1859
        %v2046 = vpop.f32.mrb[0].mxu0
        %v2047 = vadd.f32 %v1822, %v2046
        %v2048 = vpop.f32.mrb[0].mxu0
        %2049 = vmatprep.mubr.f32.mxu0 0.0
        %2050 = vmatmul.mubr.f32.gmra.mrb[0].mxu0 %v1862
        %v2051 = vpop.f32.mrb[0].mxu0
        %v2052 = vadd.f32 %v1822, %v2051
        %v2053 = vpop.f32.mrb[0].mxu0
        %2054 = vmatprep.mubr.f32.mxu0 0.0
        %2055 = vmatmul.mubr.f32.gmra.mrb[0].mxu0 %v1865
        %v2056 = vpop.f32.mrb[0].mxu0
        %v2057 = vadd.f32 %v1822, %v2056
        %v2058 = vpop.f32.mrb[0].mxu0
        %2059 = vmatprep.mubr.f32.mxu0 0.0
        %2060 = vmatmul.mubr.f32.gmra.mrb[0].mxu0 %v1868
        %v2061 = vpop.f32.mrb[0].mxu0
        %v2062 = vadd.f32 %v1822, %v2061
        %v2063 = vpop.f32.mrb[0].mxu0
        %2064 = vmatprep.mubr.f32.mxu0 0.0
        %2065 = vmatmul.mubr.f32.gmra.mrb[0].mxu0 %v1871
        %v2066 = vpop.f32.mrb[0].mxu0
        %v2067 = vadd.f32 %v1822, %v2066
        %v2068 = vpop.f32.mrb[0].mxu0
        %2069 = vmatprep.mubr.f32.mxu0 0.0
        %2070 = vmatmul.mubr.f32.gmra.mrb[0].mxu0 %v1874
        %v2071 = vpop.f32.mrb[0].mxu0
        %v2072 = vadd.f32 %v1822, %v2071
        %v2073 = vpop.f32.mrb[0].mxu0
        %2074 = vmatprep.mubr.f32.mxu0 0.0
        %2075 = vmatmul.mubr.f32.gmra.mrb[0].mxu0 %v1877
        %v2076 = vpop.f32.mrb[0].mxu0
        %v2077 = vadd.f32 %v1822, %v2076
        %v2078 = vpop.f32.mrb[0].mxu0
        %2079 = vmatprep.mubr.f32.mxu0 0.0
        %2080 = vmatmul.mubr.f32.gmra.mrb[0].mxu0 %v1880
        %v2081 = vpop.f32.mrb[0].mxu0
        %v2082 = vadd.f32 %v1822, %v2081
        %v2083 = vpop.f32.mrb[0].mxu0
        %2084 = vmatprep.mubr.f32.mxu0 0.0
        %2085 = vmatmul.mubr.f32.gmra.mrb[0].mxu0 %v1883
        %v2086 = vpop.f32.mrb[0].mxu0
        %v2087 = vadd.f32 %v1822, %v2086
        %v2088 = vpop.f32.mrb[0].mxu0
        %2089 = vmatprep.mubr.f32.mxu0 0.0
        %2090 = vmatmul.mubr.f32.gmra.mrb[0].mxu0 %v1886
        %v2091 = vpop.f32.mrb[0].mxu0
        %v2092 = vadd.f32 %v1822, %v2091
        %v2093 = vpop.f32.mrb[0].mxu0
        %2094 = vmatprep.mubr.f32.mxu0 0.0
        %2095 = vmatmul.mubr.f32.gmra.mrb[0].mxu0 %v1889
        %v2096 = vpop.f32.mrb[0].mxu0
        %v2097 = vadd.f32 %v1822, %v2096
        %v2098 = vpop.f32.mrb[0].mxu0
        %2099 = vmatprep.mubr.f32.mxu0 0.0
        %2100 = vmatmul.mubr.f32.gmra.mrb[0].mxu0 %v1892
        %v2101 = vpop.f32.mrb[0].mxu0
        %v2102 = vadd.f32 %v1822, %v2101
        %v2103 = vpop.f32.mrb[0].mxu0
        %2104 = vmatprep.mubr.f32.mxu0 0.0
        %2105 = vmatmul.mubr.f32.gmra.mrb[0].mxu0 %v1895
        %v2106 = vpop.f32.mrb[0].mxu0
        %v2107 = vadd.f32 %v1822, %v2106
        %v2108 = vpop.f32.mrb[0].mxu0
        %2109 = vmatprep.mubr.f32.mxu0 0.0
        %2110 = vmatmul.mubr.f32.gmra.mrb[0].mxu0 %v1898
        %v2111 = vpop.f32.mrb[0].mxu0
        %v2112 = vadd.f32 %v1822, %v2111
        %v2113 = vpop.f32.mrb[0].mxu0
        %2114 = vmatprep.mubr.f32.mxu0 0.0
        %2115 = vmatmul.mubr.f32.gmra.mrb[0].mxu0 %v1901
        %v2116 = vpop.f32.mrb[0].mxu0
        %v2117 = vadd.f32 %v1822, %v2116
        %v2118 = vpop.f32.mrb[0].mxu0
        %2119 = vmatprep.mubr.f32.mxu0 0.0
        %2120 = vmatmul.mubr.f32.gmra.mrb[0].mxu0 %v1904
        %v2121 = vpop.f32.mrb[0].mxu0
        %v2122 = vadd.f32 %v1822, %v2121
        %v2123 = vpop.f32.mrb[0].mxu0
        %2124 = vmatprep.mubr.f32.mxu0 0.0
        %2125 = vmatmul.mubr.f32.gmra.mrb[0].mxu0 %v1907
        %v2126 = vpop.f32.mrb[0].mxu0
        %v2127 = vadd.f32 %v1822, %v2126
        %v2128 = vpop.f32.mrb[0].mxu0
        %2129 = vmatprep.mubr.f32.mxu0 0.0
        %2130 = vmatmul.mubr.f32.gmra.mrb[0].mxu0 %v1910
        %v2131 = vpop.f32.mrb[0].mxu0
        %v2132 = vadd.f32 %v1822, %v2131
        %v2133 = vpop.f32.mrb[0].mxu0
        %2134 = vmatprep.mubr.f32.mxu0 0.0
        %2135 = vmatmul.mubr.f32.gmra.mrb[0].mxu0 %v1913
        %v2136 = vpop.f32.mrb[0].mxu0
        %v2137 = vadd.f32 %v1822, %v2136
        %v2138 = vpop.f32.mrb[0].mxu0
        %2139 = vmatprep.mubr.f32.mxu0 0.0
        %2140 = vmatmul.mubr.f32.gmra.mrb[0].mxu0 %v1916
        %v2141 = vpop.f32.mrb[0].mxu0
        %v2142 = vadd.f32 %v1822, %v2141
        %v2143 = vpop.f32.mrb[0].mxu0
        %2144 = vmatprep.mubr.f32.mxu0 0.0
        %2145 = vmatmul.mubr.f32.gmra.mrb[0].mxu0 %v1919
        %v2146 = vpop.f32.mrb[0].mxu0
        %v2147 = vadd.f32 %v1822, %v2146
        %v2148 = vpop.f32.mrb[0].mxu0
        %2149 = vdwg.mxu0
        %2150 = vst [vmem:[%s163] sm:$0xff] %v1992
        %2151 = vst [vmem:[%s163 + $0x8] sm:$0xff] %v1997
        %2152 = vst [vmem:[%s163 + $0x10] sm:$0xff] %v2002
        %2153 = vst [vmem:[%s163 + $0x18] sm:$0xff] %v2007
        %2154 = vst [vmem:[%s163 + $0x20] sm:$0xff] %v2012
        %2155 = vst [vmem:[%s163 + $0x28] sm:$0xff] %v2017
        %2156 = vst [vmem:[%s163 + $0x30] sm:$0xff] %v2022
        %2157 = vst [vmem:[%s163 + $0x38] sm:$0xff] %v2027
        %2158 = vst [vmem:[%s163 + $0x40] sm:$0xff] %v2032
        %2159 = vst [vmem:[%s163 + $0x48] sm:$0xff] %v2037
        %2160 = vst [vmem:[%s163 + $0x50] sm:$0xff] %v2042
        %2161 = vst [vmem:[%s163 + $0x58] sm:$0xff] %v2047
        %2162 = vst [vmem:[%s163 + $0x60] sm:$0xff] %v2052
        %2163 = vst [vmem:[%s163 + $0x68] sm:$0xff] %v2057
        %2164 = vst [vmem:[%s163 + $0x70] sm:$0xff] %v2062
        %2165 = vst [vmem:[%s163 + $0x78] sm:$0xff] %v2067
        %2166 = vst [vmem:[%s163 + $0x80] sm:$0xff] %v2072
        %2167 = vst [vmem:[%s163 + $0x88] sm:$0xff] %v2077
        %2168 = vst [vmem:[%s163 + $0x90] sm:$0xff] %v2082
        %2169 = vst [vmem:[%s163 + $0x98] sm:$0xff] %v2087
        %2170 = vst [vmem:[%s163 + $0xa0] sm:$0xff] %v2092
        %2171 = vst [vmem:[%s163 + $0xa8] sm:$0xff] %v2097
        %2172 = vst [vmem:[%s163 + $0xb0] sm:$0xff] %v2102
        %2173 = vst [vmem:[%s163 + $0xb8] sm:$0xff] %v2107
        %2174 = vst [vmem:[%s163 + $0xc0] sm:$0xff] %v2112
        %2175 = vst [vmem:[%s163 + $0xc8] sm:$0xff] %v2117
        %2176 = vst [vmem:[%s163 + $0xd0] sm:$0xff] %v2122
        %2177 = vst [vmem:[%s163 + $0xd8] sm:$0xff] %v2127
        %2178 = vst [vmem:[%s163 + $0xe0] sm:$0xff] %v2132
        %2179 = vst [vmem:[%s163 + $0xe8] sm:$0xff] %v2137
        %2180 = vst [vmem:[%s163 + $0xf0] sm:$0xff] %v2142
        %2181 = vst [vmem:[%s163 + $0xf8] sm:$0xff] %v2147
        %s2182 = sand.u32 %s93, 1
        %s2183 = scalar_lea.sflag [#allocation4], %s2182
        %s2184 = sand.u32 %s93, 1
        %s2185 = smul.addr %s2184, 256
        %s2186 = scalar_lea.vmem [#allocation3], %s2185
        // Predicated region
        $region33: #{tpu_custom_call.1} parent=31 // pred_check
          %p2187 = pneg %p103
        $region34: #{tpu_custom_call.1} parent=31 // pred_check_branch
          %2189 = sbr.rel (%p2187) target = $region36
        $region35: #{tpu_custom_call.1} parent=31 // pred_region
          %s2191 = ssub.s32 4096, 4096
          %2192 = vsyncadd %s2183, %s2191
          %s2193 = smul.addr %s17, 32
          %s2194 = smul.addr %s2193, 128
          %s2195 = scalar_lea.hbm %s3, %s2194
          %s2196 = sshll.u32 %s2186, 4
          %s2197 = int_to_ptr.vmem [resolvable:$true] %s2196
          %2202 = dma.vmem_to_hbm [thread:$0]  %s2197, 4096, %s2195, %s2183, 128, 128, 8
        $region36: #{tpu_custom_call.1} parent=31 // pred_fallthru
          _
      $region32: #{tpu_custom_call.1} parent=5 // pred_fallthru
        _
      %p2203 = scmp.le.s32.totalorder 2, %s12
      // Predicated region
      $region37: #{tpu_custom_call.1} parent=5 // pred_check
        %p2204 = pneg %p2203
      $region38: #{tpu_custom_call.1} parent=5 // pred_check_branch
        %2206 = sbr.rel (%p2204) target = $region40
      $region39: #{tpu_custom_call.1} parent=5 // pred_region
        %s2207 = ssub.s32 %s12, 2
        // Predicated region
        $region41: #{tpu_custom_call.1} parent=39 // pred_check
          %p2208 = pneg %p109
        $region42: #{tpu_custom_call.1} parent=39 // pred_check_branch
          %2210 = sbr.rel (%p2208) target = $region44
        $region43: #{tpu_custom_call.1} parent=39 // pred_region
          %s2211 = sand.u32 %s94, 1
          %s2212 = scalar_lea.sflag [#allocation4], %s2211
          %s2213 = sand.u32 %s94, 1
          %s2214 = smul.addr %s2213, 256
          %s2215 = scalar_lea.vmem [#allocation3], %s2214
          %2216 = dma.done %s2212, 4096
        $region44: #{tpu_custom_call.1} parent=39 // pred_fallthru
          _
      $region40: #{tpu_custom_call.1} parent=5 // pred_fallthru
        _
    $region6: #{tpu_custom_call.1} parent=1 // loop_footer
      %s16 = sadd.s32 1, %s12
    $region7: #{tpu_custom_call.1} parent=1 // loop_footer_branch
      %11 = sbr.rel target = $region3
    $region8: #{tpu_custom_call.1} parent=1 // loop_exit
      _
    %2217 = vsyncpa [#allocation4], 1
    %s2218 = scalar_lea.sflag [#allocation4], 1
    %2219 = vsyncpa %s2218, 1

</llo_original>
